<compile_context>
chip_gen: v7x
topology: tpu7x:2x2x1
jax: 0.10.0
libtpu: 0.0.40
codegen_flags: <defaults>
</compile_context>

<pallas_src>
import numpy as np

import jax
import jax.numpy as jnp
from jax.experimental import pallas as pl
from jax.experimental.pallas import tpu as pltpu


def _round_up(x, m):
    return ((x + m - 1) // m) * m


def _cdiv(a, b):
    return -(-a // b)


def hetero_gcn_kernel(adj_ref, xw_hi_ref, xw_lo_ref, norm_ref, bsum_ref, out_ref):
    """One (dst-group d, row-tile r) output block, reduced over (etype e, src-tile s).

    Grid = (D, R, E, S); the two innermost ("arbitrary") axes are reductions.  The
    output BlockSpec returns the same block index for every (e, s), so out_ref stays
    resident in VMEM across the whole reduction and we accumulate into it directly.
    """
    e = pl.program_id(2)
    s = pl.program_id(3)

    @pl.when((e == 0) & (s == 0))
    def _():
        # Bias hoisted out of the etype loop: sum_e (h_e @ W_e + b_e)
        #   = sum_e h_e @ W_e + sum_e b_e  -> seed the accumulator with sum_e b_e.
        out_ref[...] = jnp.broadcast_to(bsum_ref[...], out_ref.shape)

    adj = adj_ref[...]                                   # bf16 0/1, fed straight to MXU
    # hi/lo split keeps full f32 accuracy with single-pass bf16 MXU matmuls.
    part = jnp.dot(adj, xw_hi_ref[...], preferred_element_type=jnp.float32)
    part = part + jnp.dot(adj, xw_lo_ref[...], preferred_element_type=jnp.float32)
    # norm = 1/clamp(in_degree,1) is per dst row; applying it per source tile is exact
    # because the operation is linear in the source-tile partial sums.
    out_ref[...] += part * norm_ref[...]


def hetero_gcn_pallas(adj, xw_hi, xw_lo, norm, bsum, *, tm, ts):
    """adj   : (D, E, Nd_pad, Ns_pad) bf16   dense 0/1 adjacency (rows = dst)
       xw_hi : (D, E, Ns_pad, Fout_pad) bf16   high bf16 part of feats[src] @ W
       xw_lo : (D, E, Ns_pad, Fout_pad) bf16   low  bf16 part (xw - xw_hi)
       norm  : (D, E, Nd_pad, 1) f32           1 / clamp(in_degree, 1)
       bsum  : (D, 1, Fout_pad) f32            sum of biases over the etypes of group d
       returns (D, Nd_pad, Fout_pad) f32
    """
    D, E, Nd_pad, Ns_pad = adj.shape
    Fout_pad = xw_hi.shape[-1]
    R = Nd_pad // tm
    S = Ns_pad // ts

    # Advisory cost estimate, reflecting the *actual* schedule (xw streamed R times).
    flops = 2 * 2 * D * E * Nd_pad * Ns_pad * Fout_pad
    bytes_accessed = int(
        adj.size * 2                       # adjacency streamed exactly once
        + R * (xw_hi.size + xw_lo.size) * 2
        + S * norm.size * 4
        + bsum.size * 4
        + D * Nd_pad * Fout_pad * 4
    )

    # Per-block VMEM footprint (double-buffered inputs + resident output block).
    blk_bytes = (
        2 * (tm * ts * 2                   # adj block (bf16)
             + 2 * ts * Fout_pad * 2       # xw_hi + xw_lo blocks (bf16)
             + tm * 4                      # norm block
             + Fout_pad * 4)               # bias-sum block
        + 2 * tm * Fout_pad * 4            # output block (+ headroom)
    )
    try:
        info = pltpu.get_tpu_info()
        vmem_cap = int(getattr(info, "vmem_capacity_bytes", 64 * 1024 * 1024))
    except Exception:
        vmem_cap = 64 * 1024 * 1024
    # Generation-aware cap: ~80% of physical VMEM (>64 MiB allowed on v5e/v6e,
    # headroom left for compiler scratch on v7x's 64 MiB).
    vmem_limit = int(min(max(2 * blk_bytes, 16 * 1024 * 1024), 0.8 * vmem_cap))

    return pl.pallas_call(
        hetero_gcn_kernel,
        out_shape=jax.ShapeDtypeStruct((D, Nd_pad, Fout_pad), jnp.float32),
        grid=(D, R, E, S),
        in_specs=[
            pl.BlockSpec((None, None, tm, ts),
                         lambda d, r, e, s: (d, e, r, s)),
            pl.BlockSpec((None, None, ts, Fout_pad),
                         lambda d, r, e, s: (d, e, s, 0)),
            pl.BlockSpec((None, None, ts, Fout_pad),
                         lambda d, r, e, s: (d, e, s, 0)),
            pl.BlockSpec((None, None, tm, 1),
                         lambda d, r, e, s: (d, e, r, 0)),
            pl.BlockSpec((None, 1, Fout_pad),
                         lambda d, r, e, s: (d, 0, 0)),
        ],
        out_specs=pl.BlockSpec((None, tm, Fout_pad),
                               lambda d, r, e, s: (d, r, 0)),
        compiler_params=pltpu.CompilerParams(
            dimension_semantics=("parallel", "parallel", "arbitrary", "arbitrary"),
            vmem_limit_bytes=vmem_limit,
        ),
        cost_estimate=pl.CostEstimate(
            flops=flops, transcendentals=0, bytes_accessed=bytes_accessed),
    )(adj, xw_hi, xw_lo, norm, bsum)


def basic_hetero_gcn_forward(graph, feats, params, *, max_row_tile=512, max_src_tile=2048):
    """graph : {(src_ntype, etype, dst_ntype): dense 0/1 adjacency [N_dst, N_src]}
       feats : {ntype: [N, in_feat]}
       params: {etype: {'weight': [in_feat, out_feat], 'bias': [out_feat]}}
       returns {dst_ntype: [N_dst, out_feat]}   (sum over incoming etypes)"""
    Fout = next(iter(params.values()))["weight"].shape[-1]

    dst_groups = {}
    for cet in graph:
        dst_groups.setdefault(cet[2], []).append(cet)
    dst_list = sorted(dst_groups.keys())

    # Every etype into a given dst ntype must agree on the number of dst rows.
    nd_of = {}
    for (src, et, dst), a in graph.items():
        nd = a.shape[0]
        assert nd_of.setdefault(dst, nd) == nd, f"inconsistent dst-row count for {dst}"
        assert a.shape[1] == feats[src].shape[0], f"adjacency/src-feature mismatch {et}"

    D = len(dst_list)
    E = max(len(v) for v in dst_groups.values())
    Nd_max = max(nd_of.values())
    Ns_max = max(f.shape[0] for f in feats.values())

    # Lane/sublane friendly padding: Fout to 128 lanes (unmasked vst, full MXU N),
    # source axis tiled in 128-multiples, dst row tile >= 256 to feed the 256-wide MXU.
    Fout_pad = _round_up(Fout, 128)
    ts = min(max_src_tile, _round_up(Ns_max, 128))
    Ns_pad = _round_up(Ns_max, ts)

    tm = min(max_row_tile, _round_up(max(Nd_max, 256), 256))
    # Megacore balance (v7x has 2 TensorCores): try to expose >= 2 parallel blocks.
    while D * _cdiv(Nd_max, tm) < 2 and tm > 128:
        tm //= 2
    Nd_pad = _round_up(Nd_max, tm)

    # ---- host-side packing (single device transfer, no jnp .at[].set() chain) ----
    adj_np = np.zeros((D, E, Nd_pad, Ns_pad), np.float32)
    norm_np = np.ones((D, E, Nd_pad, 1), np.float32)
    bsum_np = np.zeros((D, 1, Fout_pad), np.float32)

    xw_rows = []
    for d, dst in enumerate(dst_list):
        row = []
        for e in range(E):
            if e < len(dst_groups[dst]):
                src, et, _ = dst_groups[dst][e]
                a = np.asarray(graph[(src, et, dst)], np.float32)
                nd, ns = a.shape
                adj_np[d, e, :nd, :ns] = a
                deg = np.maximum(a.sum(axis=-1, keepdims=True), 1.0)
                norm_np[d, e, :nd, :] = 1.0 / deg
                bsum_np[d, 0, :Fout] += np.asarray(params[et]["bias"], np.float32)
                # Hoisted x @ W in full f32 (exact), done once per (dst, etype).
                xw = jnp.dot(feats[src].astype(jnp.float32),
                             params[et]["weight"].astype(jnp.float32),
                             precision=jax.lax.Precision.HIGHEST)
                xw = jnp.pad(xw, ((0, Ns_pad - xw.shape[0]),
                                  (0, Fout_pad - Fout)))
            else:
                # Padded etype slot: adj stays 0, xw stays 0 -> contributes exactly 0.
                xw = jnp.zeros((Ns_pad, Fout_pad), jnp.float32)
            row.append(xw)
        xw_rows.append(jnp.stack(row))
    xw_f32 = jnp.stack(xw_rows)                               # (D, E, Ns_pad, Fout_pad)

    # hi/lo bf16 split so the kernel can use single-pass bf16 MXU matmuls exactly.
    xw_hi = xw_f32.astype(jnp.bfloat16)
    xw_lo = (xw_f32 - xw_hi.astype(jnp.float32)).astype(jnp.bfloat16)

    adj = jnp.asarray(adj_np).astype(jnp.bfloat16)            # 0/1 exact in bf16
    norm = jnp.asarray(norm_np)
    bsum = jnp.asarray(bsum_np)

    out_pad = hetero_gcn_pallas(adj, xw_hi, xw_lo, norm, bsum, tm=tm, ts=ts)

    # Note: padded dst rows carry the bias-sum seed; they are sliced off here.
    out = {}
    for d, dst in enumerate(dst_list):
        out[dst] = out_pad[d, :nd_of[dst], :Fout]
    return out


def reference_forward(graph, feats, params):
    """Pure-JAX f32 reference (dgl GraphConv norm='right' + HeteroGraphConv 'sum')."""
    out = {}
    hp = jax.lax.Precision.HIGHEST
    for (src, et, dst), adj in graph.items():
        adj = adj.astype(jnp.float32)
        deg = jnp.maximum(jnp.sum(adj, axis=-1, keepdims=True), 1.0)
        h = jnp.dot(adj, feats[src].astype(jnp.float32), precision=hp) / deg
        y = jnp.dot(h, params[et]["weight"].astype(jnp.float32), precision=hp)
        y = y + params[et]["bias"].astype(jnp.float32)
        out[dst] = out.get(dst, 0.0) + y
    return out


if __name__ == "__main__":
    key = jax.random.PRNGKey(0)

    # Small synthetic heterogeneous graph.
    ntypes = ["user", "item"]
    canonical_etypes = [
        ("user", "follows", "user"),
        ("user", "buys", "item"),
        ("item", "bought_by", "user"),
    ]
    N = 16          # nodes per ntype
    in_feat = 32
    out_feat = 32

    feats = {}
    for nt in ntypes:
        key, sub = jax.random.split(key)
        feats[nt] = jax.random.normal(sub, (N, in_feat), dtype=jnp.float32)

    graph = {}
    for cet in canonical_etypes:
        key, sub = jax.random.split(key)
        graph[cet] = jax.random.bernoulli(sub, 0.25, (N, N)).astype(jnp.float32)

    params = {}
    for _, et, _ in canonical_etypes:
        key, kw, kb = jax.random.split(key, 3)
        params[et] = {
            "weight": 0.1 * jax.random.normal(kw, (in_feat, out_feat), dtype=jnp.float32),
            "bias": 0.1 * jax.random.normal(kb, (out_feat,), dtype=jnp.float32),
        }

    out = basic_hetero_gcn_forward(graph, feats, params)
    out = {k: jax.block_until_ready(v) for k, v in out.items()}

    ref = reference_forward(graph, feats, params)
    for nt in out:
        assert out[nt].shape == (N, out_feat)
        assert jnp.allclose(out[nt], ref[nt], rtol=1e-5, atol=1e-5), nt

    print("KERNEL_OK")
</pallas_src>

<mosaic_0001>
module attributes {stable_mosaic.version = 11 : i64} {
  func.func @hetero_gcn_kernel(%arg0: i32, %arg1: i32, %arg2: i32, %arg3: i32, %arg4: memref<1x1x256x128xbf16, #tpu.memory_space<vmem>>, %arg5: memref<1x1x128x128xbf16, #tpu.memory_space<vmem>>, %arg6: memref<1x1x128x128xbf16, #tpu.memory_space<vmem>>, %arg7: memref<1x1x256x1xf32, #tpu.memory_space<vmem>>, %arg8: memref<1x1x128xf32, #tpu.memory_space<vmem>>, %arg9: memref<1x256x128xf32, #tpu.memory_space<vmem>>) attributes {dimension_semantics = [#tpu.dimension_semantics<parallel>, #tpu.dimension_semantics<parallel>, #tpu.dimension_semantics<arbitrary>, #tpu.dimension_semantics<arbitrary>], iteration_bounds = array<i64: 2, 1, 2, 1>, scalar_prefetch = 0 : i64, scratch_operands = 0 : i64, tpu.core_type = #tpu.core_type<tc>, window_params = [{transform_indices = @transform_0, window_bounds = array<i64: 1, 1, 256, 128>}, {transform_indices = @transform_1, window_bounds = array<i64: 1, 1, 128, 128>}, {transform_indices = @transform_2, window_bounds = array<i64: 1, 1, 128, 128>}, {transform_indices = @transform_3, window_bounds = array<i64: 1, 1, 256, 1>}, {transform_indices = @transform_4, window_bounds = array<i64: 1, 1, 128>}, {transform_indices = @transform_5, window_bounds = array<i64: 1, 256, 128>}]} {
    %c0_i32 = arith.constant 0 : i32
    %0 = arith.cmpi eq, %arg2, %c0_i32 : i32
    %c0_i32_0 = arith.constant 0 : i32
    %1 = arith.cmpi eq, %arg3, %c0_i32_0 : i32
    %2 = arith.andi %0, %1 : i1
    %3 = arith.extui %2 : i1 to i32
    %c0_i32_1 = arith.constant 0 : i32
    %4 = arith.cmpi ne, %3, %c0_i32_1 : i32
    scf.if %4 {
      %c0_24 = arith.constant 0 : index
      %c0_25 = arith.constant 0 : index
      %c0_26 = arith.constant 0 : index
      %24 = vector.load %arg8[%c0_24, %c0_25, %c0_26] : memref<1x1x128xf32, #tpu.memory_space<vmem>>, vector<1x1x128xf32>
      %25 = vector.shape_cast %24 : vector<1x1x128xf32> to vector<1x128xf32>
      %26 = vector.shape_cast %25 : vector<1x128xf32> to vector<1x128xf32>
      %27 = vector.broadcast %26 : vector<1x128xf32> to vector<256x128xf32>
      %c0_27 = arith.constant 0 : index
      %c0_28 = arith.constant 0 : index
      %c0_29 = arith.constant 0 : index
      %28 = vector.load %arg9[%c0_27, %c0_28, %c0_29] : memref<1x256x128xf32, #tpu.memory_space<vmem>>, vector<1x256x128xf32>
      %29 = vector.shape_cast %28 : vector<1x256x128xf32> to vector<256x128xf32>
      %30 = vector.shape_cast %27 : vector<256x128xf32> to vector<1x256x128xf32>
      tpu.vector_store %arg9[%c0_27, %c0_28, %c0_29], %30 {strides = array<i32>} : memref<1x256x128xf32, #tpu.memory_space<vmem>>, vector<1x256x128xf32>,
    } else {
    }
    %c0 = arith.constant 0 : index
    %c0_2 = arith.constant 0 : index
    %c0_3 = arith.constant 0 : index
    %c0_4 = arith.constant 0 : index
    %5 = vector.load %arg4[%c0, %c0_2, %c0_3, %c0_4] : memref<1x1x256x128xbf16, #tpu.memory_space<vmem>>, vector<1x1x256x128xbf16>
    %6 = vector.shape_cast %5 : vector<1x1x256x128xbf16> to vector<256x128xbf16>
    %c0_5 = arith.constant 0 : index
    %c0_6 = arith.constant 0 : index
    %c0_7 = arith.constant 0 : index
    %c0_8 = arith.constant 0 : index
    %7 = vector.load %arg5[%c0_5, %c0_6, %c0_7, %c0_8] : memref<1x1x128x128xbf16, #tpu.memory_space<vmem>>, vector<1x1x128x128xbf16>
    %8 = vector.shape_cast %7 : vector<1x1x128x128xbf16> to vector<128x128xbf16>
    %cst = arith.constant dense<0.000000e+00> : vector<256x128xf32>
    %9 = tpu.matmul %6, %8, %cst {dimension_numbers = #tpu.dot_dimension_numbers<[1], [0], [0], [1], [0, 0, 1, 1], [], []>} : vector<256x128xbf16>, vector<128x128xbf16>, vector<256x128xf32> -> vector<256x128xf32>
    %c0_9 = arith.constant 0 : index
    %c0_10 = arith.constant 0 : index
    %c0_11 = arith.constant 0 : index
    %c0_12 = arith.constant 0 : index
    %10 = vector.load %arg6[%c0_9, %c0_10, %c0_11, %c0_12] : memref<1x1x128x128xbf16, #tpu.memory_space<vmem>>, vector<1x1x128x128xbf16>
    %11 = vector.shape_cast %10 : vector<1x1x128x128xbf16> to vector<128x128xbf16>
    %cst_13 = arith.constant dense<0.000000e+00> : vector<256x128xf32>
    %12 = tpu.matmul %6, %11, %cst_13 {dimension_numbers = #tpu.dot_dimension_numbers<[1], [0], [0], [1], [0, 0, 1, 1], [], []>} : vector<256x128xbf16>, vector<128x128xbf16>, vector<256x128xf32> -> vector<256x128xf32>
    %13 = arith.addf %9, %12 : vector<256x128xf32>
    %c0_14 = arith.constant 0 : index
    %c0_15 = arith.constant 0 : index
    %c0_16 = arith.constant 0 : index
    %14 = vector.load %arg9[%c0_14, %c0_15, %c0_16] : memref<1x256x128xf32, #tpu.memory_space<vmem>>, vector<1x256x128xf32>
    %15 = vector.shape_cast %14 : vector<1x256x128xf32> to vector<256x128xf32>
    %c0_17 = arith.constant 0 : index
    %c0_18 = arith.constant 0 : index
    %c0_19 = arith.constant 0 : index
    %c0_20 = arith.constant 0 : index
    %16 = vector.load %arg7[%c0_17, %c0_18, %c0_19, %c0_20] : memref<1x1x256x1xf32, #tpu.memory_space<vmem>>, vector<1x1x256x1xf32>
    %17 = vector.shape_cast %16 : vector<1x1x256x1xf32> to vector<256x1xf32>
    %18 = vector.broadcast %17 : vector<256x1xf32> to vector<256x128xf32>
    %19 = arith.mulf %13, %18 : vector<256x128xf32>
    %20 = arith.addf %15, %19 : vector<256x128xf32>
    %c0_21 = arith.constant 0 : index
    %c0_22 = arith.constant 0 : index
    %c0_23 = arith.constant 0 : index
    %21 = vector.load %arg9[%c0_21, %c0_22, %c0_23] : memref<1x256x128xf32, #tpu.memory_space<vmem>>, vector<1x256x128xf32>
    %22 = vector.shape_cast %21 : vector<1x256x128xf32> to vector<256x128xf32>
    %23 = vector.shape_cast %20 : vector<256x128xf32> to vector<1x256x128xf32>
    tpu.vector_store %arg9[%c0_21, %c0_22, %c0_23], %23 {strides = array<i32>} : memref<1x256x128xf32, #tpu.memory_space<vmem>>, vector<1x256x128xf32>,
    return
  }
  func.func @transform_0(%arg0: i32, %arg1: i32, %arg2: i32, %arg3: i32) -> (i32, i32, i32, i32) {
    %c0_i32 = arith.constant 0 : i32
    return %arg0, %arg2, %arg1, %arg3 : i32, i32, i32, i32
  }
  func.func @transform_1(%arg0: i32, %arg1: i32, %arg2: i32, %arg3: i32) -> (i32, i32, i32, i32) {
    %c0_i32 = arith.constant 0 : i32
    %c0_i32_0 = arith.constant 0 : i32
    return %arg0, %arg2, %arg3, %c0_i32 : i32, i32, i32, i32
  }
  func.func @transform_2(%arg0: i32, %arg1: i32, %arg2: i32, %arg3: i32) -> (i32, i32, i32, i32) {
    %c0_i32 = arith.constant 0 : i32
    %c0_i32_0 = arith.constant 0 : i32
    return %arg0, %arg2, %arg3, %c0_i32 : i32, i32, i32, i32
  }
  func.func @transform_3(%arg0: i32, %arg1: i32, %arg2: i32, %arg3: i32) -> (i32, i32, i32, i32) {
    %c0_i32 = arith.constant 0 : i32
    %c0_i32_0 = arith.constant 0 : i32
    return %arg0, %arg2, %arg1, %c0_i32 : i32, i32, i32, i32
  }
  func.func @transform_4(%arg0: i32, %arg1: i32, %arg2: i32, %arg3: i32) -> (i32, i32, i32) {
    %c0_i32 = arith.constant 0 : i32
    %c0_i32_0 = arith.constant 0 : i32
    %c0_i32_1 = arith.constant 0 : i32
    return %arg0, %c0_i32, %c0_i32_0 : i32, i32, i32
  }
  func.func @transform_5(%arg0: i32, %arg1: i32, %arg2: i32, %arg3: i32) -> (i32, i32, i32) {
    %c0_i32 = arith.constant 0 : i32
    %c0_i32_0 = arith.constant 0 : i32
    return %arg0, %arg1, %c0_i32 : i32, i32, i32
  }
}

</mosaic_0001>

<llo_original>
// kernel: tpu_custom_call.1
$region0: #{tpu_custom_call.1}
  #allocation0 [shape = 'u32[]', space=smem, size = 0x4, offset = 0x4, fixed_abs, tag = 'smem constant byte address 0x4 - core index']
  #allocation1 [shape = 'u32[144,128]{1,0:T(1,128)}', space=vmem, size = 0x12000, scoped, tag = 'internal scratch']
  %s0 = inlined_call_operand.vmem [shape: bf16[2,2,256,128], index: 0, kind: input, shape index: {}]
  %s1 = inlined_call_operand.vmem [shape: bf16[2,2,128,128], index: 1, kind: input, shape index: {}]
  %s2 = inlined_call_operand.vmem [shape: bf16[2,2,128,128], index: 2, kind: input, shape index: {}]
  %s3 = inlined_call_operand.vmem [shape: f32[2,2,256,1], index: 3, kind: input, shape index: {}]
  %s4 = inlined_call_operand.vmem [shape: f32[2,1,128], index: 4, kind: input, shape index: {}]
  %s5 = inlined_call_operand.hbm [shape: f32[2,256,128], index: 5, kind: output, shape index: {}]
  %s6 = sld [smem:[#allocation0]]
  $region57: #{tpu_custom_call.1} parent=0
    _
  %s8 = ssub.s32 1, %s6
  %s9 = scalar_select 0, %s8, %s6
  $region1: #{tpu_custom_call.1} parent=0
    #allocation2 [shape = 'u8[262144]{0}', space=vmem, size = 0x40000, scoped, tag = 'output window, operand 0']
    #allocation3 [shape = 's32[2]{0}', space=sflag, size = 0x8, scoped, tag = 'scoped memory for tpu_custom_call.1']
    %10 = vsyncpa [#allocation3], 0
    %s11 = scalar_lea.sflag [#allocation3], 1
    %12 = vsyncpa %s11, 0
    loop: start=0, step=1, limit=6
    $region2: #{tpu_custom_call.1} parent=1 // loop_pre_header
      _
    $region3: #{tpu_custom_call.1} parent=1 // loop_header
      %s14 = sphi 0, %s18
      %p15 = scmp.ge.s32.totalorder %s14, 6
      %s21 = sphi 0, %s47
      %s22 = sphi 0, %s43
      %s23 = sphi 0, %s39
      %s24 = sphi 0, %s35
      %s25 = sphi 0, %s21
      %s26 = sphi 0, %s22
      %s27 = sphi 0, %s23
      %s28 = sphi 0, %s24
      %s29 = sphi 0, %s25
      %s30 = sphi 0, %s26
      %s31 = sphi 0, %s27
      %s32 = sphi 0, %s28
      %s56 = sphi 0, %s58
      %s59 = sphi 0, %s56
      %s60 = sphi 0, %s59
      %s76 = sphi 0, %s60
      %s86 = sphi 0, %s88
      %s89 = sphi 0, %s86
      %s90 = sphi 0, %s89
      %s106 = sphi 0, %s90
      %s116 = sphi 0, %s118
      %s119 = sphi 0, %s116
      %s120 = sphi 0, %s119
      %s136 = sphi 0, %s120
      %s146 = sphi 0, %s148
      %s149 = sphi 0, %s146
      %s150 = sphi 0, %s149
      %s166 = sphi 0, %s150
      %s172 = sphi 0, %s174
      %s175 = sphi 0, %s172
      %s176 = sphi 0, %s175
      %s192 = sphi 0, %s176
      %s200 = sphi 0, %s202
      %s203 = sphi 0, %s200
      %s204 = sphi 0, %s203
      %s220 = sphi 0, %s204
    $region4: #{tpu_custom_call.1} parent=1 // loop_header_branch
      %17 = sbr.rel (%p15) target = $region8
    $region5: #{tpu_custom_call.1} parent=1 // loop_body
      %s19 = ssub.s32 %s14, 1
      %s20 = ssub.s32 %s14, 2
      %s33 = sadd.s32 1, %s24
      %p34 = scmp.ge.s32.totalorder %s33, 1
      %s35 = scalar_select %p34, 0, %s33
      %s36 = sadd.s32 1, %s23
      %s37 = scalar_select %p34, %s36, %s23
      %p38 = scmp.ge.s32.totalorder %s37, 2
      %s39 = scalar_select %p38, 0, %s37
      %s40 = sadd.s32 1, %s22
      %s41 = scalar_select %p38, %s40, %s22
      %p42 = scmp.ge.s32.totalorder %s41, 1
      %s43 = scalar_select %p42, 0, %s41
      %s44 = sadd.s32 1, %s21
      %s45 = scalar_select %p42, %s44, %s21
      %p46 = scmp.ge.s32.totalorder %s45, 2
      %s47 = scalar_select %p46, 0, %s45
      %s48 = ssub.s32 %s21, %s47
      %s49 = ssub.s32 %s23, %s39
      %s50 = sor.u32 %s48, %s49
      %s51 = ssub.s32 %s22, %s43
      %s52 = sor.u32 %s50, %s51
      %s53 = ssub.s32 %s24, %s35
      %s54 = sor.u32 %s52, %s53
      %p55 = scmp.eq.s32.totalorder %s54, 0
      %s57 = sadd.s32 %s56, 1
      %s58 = scalar_select %p55, %s56, %s57
      %p61 = pneg %p55
      %p62 = scmp.eq.s32.totalorder %s14, 3
      %p63 = por %p61, %p62
      %p64 = scmp.ne.s32.totalorder %s56, %s59
      %p65 = scmp.eq.s32.totalorder %s14, 0
      %p66 = por %p64, %p65
      %p67 = scmp.ne.s32.totalorder %s56, %s59
      %p68 = scmp.eq.s32.totalorder %s19, 3
      %p69 = por %p67, %p68
      %p70 = scmp.ne.s32.totalorder %s59, %s60
      %p71 = scmp.eq.s32.totalorder %s19, 0
      %p72 = por %p70, %p71
      %p73 = scmp.ne.s32.totalorder %s59, %s60
      %p74 = scmp.eq.s32.totalorder %s20, 3
      %p75 = por %p73, %p74
      %p77 = scmp.ne.s32.totalorder %s60, %s76
      %p78 = scmp.eq.s32.totalorder %s20, 0
      %p79 = por %p77, %p78
      %s80 = ssub.s32 %s21, %s47
      %s81 = ssub.s32 %s23, %s39
      %s82 = sor.u32 %s80, %s81
      %s83 = ssub.s32 %s24, %s35
      %s84 = sor.u32 %s82, %s83
      %p85 = scmp.eq.s32.totalorder %s84, 0
      %s87 = sadd.s32 %s86, 1
      %s88 = scalar_select %p85, %s86, %s87
      %p91 = pneg %p85
      %p92 = scmp.eq.s32.totalorder %s14, 3
      %p93 = por %p91, %p92
      %p94 = scmp.ne.s32.totalorder %s86, %s89
      %p95 = scmp.eq.s32.totalorder %s14, 0
      %p96 = por %p94, %p95
      %p97 = scmp.ne.s32.totalorder %s86, %s89
      %p98 = scmp.eq.s32.totalorder %s19, 3
      %p99 = por %p97, %p98
      %p100 = scmp.ne.s32.totalorder %s89, %s90
      %p101 = scmp.eq.s32.totalorder %s19, 0
      %p102 = por %p100, %p101
      %p103 = scmp.ne.s32.totalorder %s89, %s90
      %p104 = scmp.eq.s32.totalorder %s20, 3
      %p105 = por %p103, %p104
      %p107 = scmp.ne.s32.totalorder %s90, %s106
      %p108 = scmp.eq.s32.totalorder %s20, 0
      %p109 = por %p107, %p108
      %s110 = ssub.s32 %s21, %s47
      %s111 = ssub.s32 %s23, %s39
      %s112 = sor.u32 %s110, %s111
      %s113 = ssub.s32 %s24, %s35
      %s114 = sor.u32 %s112, %s113
      %p115 = scmp.eq.s32.totalorder %s114, 0
      %s117 = sadd.s32 %s116, 1
      %s118 = scalar_select %p115, %s116, %s117
      %p121 = pneg %p115
      %p122 = scmp.eq.s32.totalorder %s14, 3
      %p123 = por %p121, %p122
      %p124 = scmp.ne.s32.totalorder %s116, %s119
      %p125 = scmp.eq.s32.totalorder %s14, 0
      %p126 = por %p124, %p125
      %p127 = scmp.ne.s32.totalorder %s116, %s119
      %p128 = scmp.eq.s32.totalorder %s19, 3
      %p129 = por %p127, %p128
      %p130 = scmp.ne.s32.totalorder %s119, %s120
      %p131 = scmp.eq.s32.totalorder %s19, 0
      %p132 = por %p130, %p131
      %p133 = scmp.ne.s32.totalorder %s119, %s120
      %p134 = scmp.eq.s32.totalorder %s20, 3
      %p135 = por %p133, %p134
      %p137 = scmp.ne.s32.totalorder %s120, %s136
      %p138 = scmp.eq.s32.totalorder %s20, 0
      %p139 = por %p137, %p138
      %s140 = ssub.s32 %s21, %s47
      %s141 = ssub.s32 %s23, %s39
      %s142 = sor.u32 %s140, %s141
      %s143 = ssub.s32 %s22, %s43
      %s144 = sor.u32 %s142, %s143
      %p145 = scmp.eq.s32.totalorder %s144, 0
      %s147 = sadd.s32 %s146, 1
      %s148 = scalar_select %p145, %s146, %s147
      %p151 = pneg %p145
      %p152 = scmp.eq.s32.totalorder %s14, 3
      %p153 = por %p151, %p152
      %p154 = scmp.ne.s32.totalorder %s146, %s149
      %p155 = scmp.eq.s32.totalorder %s14, 0
      %p156 = por %p154, %p155
      %p157 = scmp.ne.s32.totalorder %s146, %s149
      %p158 = scmp.eq.s32.totalorder %s19, 3
      %p159 = por %p157, %p158
      %p160 = scmp.ne.s32.totalorder %s149, %s150
      %p161 = scmp.eq.s32.totalorder %s19, 0
      %p162 = por %p160, %p161
      %p163 = scmp.ne.s32.totalorder %s149, %s150
      %p164 = scmp.eq.s32.totalorder %s20, 3
      %p165 = por %p163, %p164
      %p167 = scmp.ne.s32.totalorder %s150, %s166
      %p168 = scmp.eq.s32.totalorder %s20, 0
      %p169 = por %p167, %p168
      %s170 = ssub.s32 %s21, %s47
      %p171 = scmp.eq.s32.totalorder %s170, 0
      %s173 = sadd.s32 %s172, 1
      %s174 = scalar_select %p171, %s172, %s173
      %p177 = pneg %p171
      %p178 = scmp.eq.s32.totalorder %s14, 3
      %p179 = por %p177, %p178
      %p180 = scmp.ne.s32.totalorder %s172, %s175
      %p181 = scmp.eq.s32.totalorder %s14, 0
      %p182 = por %p180, %p181
      %p183 = scmp.ne.s32.totalorder %s172, %s175
      %p184 = scmp.eq.s32.totalorder %s19, 3
      %p185 = por %p183, %p184
      %p186 = scmp.ne.s32.totalorder %s175, %s176
      %p187 = scmp.eq.s32.totalorder %s19, 0
      %p188 = por %p186, %p187
      %p189 = scmp.ne.s32.totalorder %s175, %s176
      %p190 = scmp.eq.s32.totalorder %s20, 3
      %p191 = por %p189, %p190
      %p193 = scmp.ne.s32.totalorder %s176, %s192
      %p194 = scmp.eq.s32.totalorder %s20, 0
      %p195 = por %p193, %p194
      %s196 = ssub.s32 %s21, %s47
      %s197 = ssub.s32 %s22, %s43
      %s198 = sor.u32 %s196, %s197
      %p199 = scmp.eq.s32.totalorder %s198, 0
      %s201 = sadd.s32 %s200, 1
      %s202 = scalar_select %p199, %s200, %s201
      %p205 = pneg %p199
      %p206 = scmp.eq.s32.totalorder %s14, 3
      %p207 = por %p205, %p206
      %p208 = scmp.ne.s32.totalorder %s200, %s203
      %p209 = scmp.eq.s32.totalorder %s14, 0
      %p210 = por %p208, %p209
      %p211 = scmp.ne.s32.totalorder %s200, %s203
      %p212 = scmp.eq.s32.totalorder %s19, 3
      %p213 = por %p211, %p212
      %p214 = scmp.ne.s32.totalorder %s203, %s204
      %p215 = scmp.eq.s32.totalorder %s19, 0
      %p216 = por %p214, %p215
      %p217 = scmp.ne.s32.totalorder %s203, %s204
      %p218 = scmp.eq.s32.totalorder %s20, 3
      %p219 = por %p217, %p218
      %p221 = scmp.ne.s32.totalorder %s204, %s220
      %p222 = scmp.eq.s32.totalorder %s20, 0
      %p223 = por %p221, %p222
      %p224 = scmp.le.s32.totalorder 1, %s14
      %p225 = scmp.lt.s32.totalorder %s14, 5
      %p226 = pnand %p224, %p225
      %p227 = pneg %p226
      // Predicated region
      $region9: #{tpu_custom_call.1} parent=5 // pred_check
        _
      $region10: #{tpu_custom_call.1} parent=5 // pred_check_branch
        %229 = sbr.rel (%p226) target = $region12
      $region11: #{tpu_custom_call.1} parent=5 // pred_region
        %s230 = ssub.s32 %s14, 1
      $region12: #{tpu_custom_call.1} parent=5 // pred_fallthru
        _
      %p231 = scmp.lt.s32.totalorder %s14, 4
      // Predicated region
      $region13: #{tpu_custom_call.1} parent=5 // pred_check
        %p232 = pneg %p231
      $region14: #{tpu_custom_call.1} parent=5 // pred_check_branch
        %234 = sbr.rel (%p232) target = $region16
      $region15: #{tpu_custom_call.1} parent=5 // pred_region
        // Predicated region
        $region17: #{tpu_custom_call.1} parent=15 // pred_check
          %p235 = pneg %p66
        $region18: #{tpu_custom_call.1} parent=15 // pred_check_branch
          %237 = sbr.rel (%p235) target = $region20
        $region19: #{tpu_custom_call.1} parent=15 // pred_region
          %s238 = smul.u32 32, %s22
          %p239 = scmp.lt.s32.totalorder %s21, 1
          %s240 = scalar_select %p239, %s21, 1
          %p241 = scmp.lt.s32.totalorder %s23, 1
          %s242 = scalar_select %p241, %s23, 1
          %p243 = scmp.lt.s32.totalorder %s238, 31
          %s244 = scalar_select %p243, %s238, 31
          %p245 = scmp.lt.s32.totalorder %s24, 0
          %s246 = scalar_select %p245, %s24, 0
          %s247 = sadd.s32 %s246, %s244
          %s248 = smul.addr %s242, 32
          %s249 = sadd.s32 %s247, %s248
          %s250 = smul.addr %s240, 64
          %s251 = sadd.s32 %s249, %s250
          %s252 = smul.addr %s251, 4
          %s253 = scalar_lea.vmem %s0, %s252
          %s254 = smul.u32 32, %s22
        $region20: #{tpu_custom_call.1} parent=15 // pred_fallthru
          _
        // Predicated region
        $region21: #{tpu_custom_call.1} parent=15 // pred_check
          %p255 = pneg %p96
        $region22: #{tpu_custom_call.1} parent=15 // pred_check_branch
          %257 = sbr.rel (%p255) target = $region24
        $region23: #{tpu_custom_call.1} parent=15 // pred_region
          %s258 = smul.u32 16, %s24
          %p259 = scmp.lt.s32.totalorder %s21, 1
          %s260 = scalar_select %p259, %s21, 1
          %p261 = scmp.lt.s32.totalorder %s23, 1
          %s262 = scalar_select %p261, %s23, 1
          %p263 = scmp.lt.s32.totalorder %s258, 15
          %s264 = scalar_select %p263, %s258, 15
          %s265 = smul.addr %s262, 16
          %s266 = sadd.s32 %s264, %s265
          %s267 = smul.addr %s260, 32
          %s268 = sadd.s32 %s266, %s267
          %s269 = smul.addr %s268, 4
          %s270 = scalar_lea.vmem %s1, %s269
          %s271 = smul.u32 16, %s24
        $region24: #{tpu_custom_call.1} parent=15 // pred_fallthru
          _
        // Predicated region
        $region25: #{tpu_custom_call.1} parent=15 // pred_check
          %p272 = pneg %p126
        $region26: #{tpu_custom_call.1} parent=15 // pred_check_branch
          %274 = sbr.rel (%p272) target = $region28
        $region27: #{tpu_custom_call.1} parent=15 // pred_region
          %s275 = smul.u32 16, %s24
          %p276 = scmp.lt.s32.totalorder %s21, 1
          %s277 = scalar_select %p276, %s21, 1
          %p278 = scmp.lt.s32.totalorder %s23, 1
          %s279 = scalar_select %p278, %s23, 1
          %p280 = scmp.lt.s32.totalorder %s275, 15
          %s281 = scalar_select %p280, %s275, 15
          %s282 = smul.addr %s279, 16
          %s283 = sadd.s32 %s281, %s282
          %s284 = smul.addr %s277, 32
          %s285 = sadd.s32 %s283, %s284
          %s286 = smul.addr %s285, 4
          %s287 = scalar_lea.vmem %s2, %s286
          %s288 = smul.u32 16, %s24
        $region28: #{tpu_custom_call.1} parent=15 // pred_fallthru
          _
        // Predicated region
        $region29: #{tpu_custom_call.1} parent=15 // pred_check
          %p289 = pneg %p156
        $region30: #{tpu_custom_call.1} parent=15 // pred_check_branch
          %291 = sbr.rel (%p289) target = $region32
        $region31: #{tpu_custom_call.1} parent=15 // pred_region
          %s292 = smul.u32 32, %s22
          %p293 = scmp.lt.s32.totalorder %s21, 1
          %s294 = scalar_select %p293, %s21, 1
          %p295 = scmp.lt.s32.totalorder %s23, 1
          %s296 = scalar_select %p295, %s23, 1
          %p297 = scmp.lt.s32.totalorder %s292, 31
          %s298 = scalar_select %p297, %s292, 31
          %s299 = smul.addr %s296, 32
          %s300 = sadd.s32 %s298, %s299
          %s301 = smul.addr %s294, 64
          %s302 = sadd.s32 %s300, %s301
          %s303 = smul.addr %s302, 8
          %s304 = scalar_lea.vmem %s3, %s303
          %s305 = smul.u32 32, %s22
        $region32: #{tpu_custom_call.1} parent=15 // pred_fallthru
          _
        // Predicated region
        $region33: #{tpu_custom_call.1} parent=15 // pred_check
          %p306 = pneg %p182
        $region34: #{tpu_custom_call.1} parent=15 // pred_check_branch
          %308 = sbr.rel (%p306) target = $region36
        $region35: #{tpu_custom_call.1} parent=15 // pred_region
          %p309 = scmp.lt.s32.totalorder %s21, 1
          %s310 = scalar_select %p309, %s21, 1
          %s311 = scalar_lea.vmem %s4, %s310
        $region36: #{tpu_custom_call.1} parent=15 // pred_fallthru
          _
      $region16: #{tpu_custom_call.1} parent=5 // pred_fallthru
        _
      %p312 = scmp.le.s32.totalorder 1, %s14
      %p313 = scmp.lt.s32.totalorder %s14, 5
      %p314 = pnand %p312, %p313
      %p315 = pneg %p314
      // Predicated region
      $region37: #{tpu_custom_call.1} parent=5 // pred_check
        _
      $region38: #{tpu_custom_call.1} parent=5 // pred_check_branch
        %317 = sbr.rel (%p314) target = $region40
      $region39: #{tpu_custom_call.1} parent=5 // pred_region
        %s318 = ssub.s32 %s14, 1
        %s319 = smul.u32 32, %s26
        %p320 = scmp.lt.s32.totalorder %s25, 1
        %s321 = scalar_select %p320, %s25, 1
        %p322 = scmp.lt.s32.totalorder %s27, 1
        %s323 = scalar_select %p322, %s27, 1
        %p324 = scmp.lt.s32.totalorder %s319, 31
        %s325 = scalar_select %p324, %s319, 31
        %p326 = scmp.lt.s32.totalorder %s28, 0
        %s327 = scalar_select %p326, %s28, 0
        %s328 = sadd.s32 %s327, %s325
        %s329 = smul.addr %s323, 32
        %s330 = sadd.s32 %s328, %s329
        %s331 = smul.addr %s321, 64
        %s332 = sadd.s32 %s330, %s331
        %s333 = smul.addr %s332, 4
        %s334 = scalar_lea.vmem %s0, %s333
        %p335 = pneg %p72
        %p336 = pneg %p69
        %s337 = smul.u32 16, %s28
        %p338 = scmp.lt.s32.totalorder %s25, 1
        %s339 = scalar_select %p338, %s25, 1
        %p340 = scmp.lt.s32.totalorder %s27, 1
        %s341 = scalar_select %p340, %s27, 1
        %p342 = scmp.lt.s32.totalorder %s337, 15
        %s343 = scalar_select %p342, %s337, 15
        %s344 = smul.addr %s341, 16
        %s345 = sadd.s32 %s343, %s344
        %s346 = smul.addr %s339, 32
        %s347 = sadd.s32 %s345, %s346
        %s348 = smul.addr %s347, 4
        %s349 = scalar_lea.vmem %s1, %s348
        %p350 = pneg %p102
        %p351 = pneg %p99
        %s352 = smul.u32 16, %s28
        %p353 = scmp.lt.s32.totalorder %s25, 1
        %s354 = scalar_select %p353, %s25, 1
        %p355 = scmp.lt.s32.totalorder %s27, 1
        %s356 = scalar_select %p355, %s27, 1
        %p357 = scmp.lt.s32.totalorder %s352, 15
        %s358 = scalar_select %p357, %s352, 15
        %s359 = smul.addr %s356, 16
        %s360 = sadd.s32 %s358, %s359
        %s361 = smul.addr %s354, 32
        %s362 = sadd.s32 %s360, %s361
        %s363 = smul.addr %s362, 4
        %s364 = scalar_lea.vmem %s2, %s363
        %p365 = pneg %p132
        %p366 = pneg %p129
        %s367 = smul.u32 32, %s26
        %p368 = scmp.lt.s32.totalorder %s25, 1
        %s369 = scalar_select %p368, %s25, 1
        %p370 = scmp.lt.s32.totalorder %s27, 1
        %s371 = scalar_select %p370, %s27, 1
        %p372 = scmp.lt.s32.totalorder %s367, 31
        %s373 = scalar_select %p372, %s367, 31
        %s374 = smul.addr %s371, 32
        %s375 = sadd.s32 %s373, %s374
        %s376 = smul.addr %s369, 64
        %s377 = sadd.s32 %s375, %s376
        %s378 = smul.addr %s377, 8
        %s379 = scalar_lea.vmem %s3, %s378
        %p380 = pneg %p162
        %p381 = pneg %p159
        %p382 = scmp.lt.s32.totalorder %s25, 1
        %s383 = scalar_select %p382, %s25, 1
        %s384 = scalar_lea.vmem %s4, %s383
        %p385 = pneg %p188
        %p386 = pneg %p185
        %p387 = pneg %p216
        %p388 = pneg %p213
        %s389 = sand.u32 %s203, 1
        %s390 = scalar_lea.sflag [#allocation3], %s389
        %s391 = sand.u32 %s203, 1
        %s392 = smul.addr %s391, 256
        %s393 = scalar_lea.vmem [#allocation2], %s392
        %s394 = smul.u32 32, %s26
        %p395 = scmp.lt.s32.totalorder %s25, 1
        %s396 = scalar_select %p395, %s25, 1
        %p397 = scmp.lt.s32.totalorder %s27, 1
        %s398 = scalar_select %p397, %s27, 1
        %p399 = scmp.lt.s32.totalorder %s394, 31
        %s400 = scalar_select %p399, %s394, 31
        %p401 = scmp.lt.s32.totalorder %s28, 0
        %s402 = scalar_select %p401, %s28, 0
        %s403 = sadd.s32 %s402, %s400
        %s404 = smul.addr %s398, 32
        %s405 = sadd.s32 %s403, %s404
        %s406 = smul.addr %s396, 64
        %s407 = sadd.s32 %s405, %s406
        %s408 = smul.addr %s407, 4
        %s409 = scalar_lea.vmem %s0, %s408
        %s410 = smul.u32 32, %s26
        %s411 = smul.u32 16, %s28
        %p412 = scmp.lt.s32.totalorder %s25, 1
        %s413 = scalar_select %p412, %s25, 1
        %p414 = scmp.lt.s32.totalorder %s27, 1
        %s415 = scalar_select %p414, %s27, 1
        %p416 = scmp.lt.s32.totalorder %s411, 15
        %s417 = scalar_select %p416, %s411, 15
        %s418 = smul.addr %s415, 16
        %s419 = sadd.s32 %s417, %s418
        %s420 = smul.addr %s413, 32
        %s421 = sadd.s32 %s419, %s420
        %s422 = smul.addr %s421, 4
        %s423 = scalar_lea.vmem %s1, %s422
        %s424 = smul.u32 16, %s28
        %s425 = smul.u32 16, %s28
        %p426 = scmp.lt.s32.totalorder %s25, 1
        %s427 = scalar_select %p426, %s25, 1
        %p428 = scmp.lt.s32.totalorder %s27, 1
        %s429 = scalar_select %p428, %s27, 1
        %p430 = scmp.lt.s32.totalorder %s425, 15
        %s431 = scalar_select %p430, %s425, 15
        %s432 = smul.addr %s429, 16
        %s433 = sadd.s32 %s431, %s432
        %s434 = smul.addr %s427, 32
        %s435 = sadd.s32 %s433, %s434
        %s436 = smul.addr %s435, 4
        %s437 = scalar_lea.vmem %s2, %s436
        %s438 = smul.u32 16, %s28
        %s439 = smul.u32 32, %s26
        %p440 = scmp.lt.s32.totalorder %s25, 1
        %s441 = scalar_select %p440, %s25, 1
        %p442 = scmp.lt.s32.totalorder %s27, 1
        %s443 = scalar_select %p442, %s27, 1
        %p444 = scmp.lt.s32.totalorder %s439, 31
        %s445 = scalar_select %p444, %s439, 31
        %s446 = smul.addr %s443, 32
        %s447 = sadd.s32 %s445, %s446
        %s448 = smul.addr %s441, 64
        %s449 = sadd.s32 %s447, %s448
        %s450 = smul.addr %s449, 8
        %s451 = scalar_lea.vmem %s3, %s450
        %s452 = smul.u32 32, %s26
        %p453 = scmp.lt.s32.totalorder %s25, 1
        %s454 = scalar_select %p453, %s25, 1
        %s455 = scalar_lea.vmem %s4, %s454
        %s456 = smul.u32 32, %s26
        %p458 = scmp.eq.s32.totalorder %s27, 0
        %p459 = scmp.eq.s32.totalorder %s28, 0
        %p460 = pnand %p458, %p459
        %p461 = pneg %p460
        // Predicated region
        $region41: #{tpu_custom_call.1} parent=39 // pred_check
          _
        $region42: #{tpu_custom_call.1} parent=39 // pred_check_branch
          %463 = sbr.rel (%p460) target = $region44
        $region43: #{tpu_custom_call.1} parent=39 // pred_region
          %v464 = vld [vmem:[%s455] sm:$0x1]
          %v466 = vlaneseq
          %v467 = vshrl.u32 %v466, 7
          %v468 = vsub.s32 0, %v467
          %v469 = vrot.slane %v464, %v468
          %471 = vst [vmem:[%s393] sm:$0xff] %v469
          %472 = vst [vmem:[%s393 + $0x8] sm:$0xff] %v469
          %473 = vst [vmem:[%s393 + $0x10] sm:$0xff] %v469
          %474 = vst [vmem:[%s393 + $0x18] sm:$0xff] %v469
          %475 = vst [vmem:[%s393 + $0x20] sm:$0xff] %v469
          %476 = vst [vmem:[%s393 + $0x28] sm:$0xff] %v469
          %477 = vst [vmem:[%s393 + $0x30] sm:$0xff] %v469
          %478 = vst [vmem:[%s393 + $0x38] sm:$0xff] %v469
          %479 = vst [vmem:[%s393 + $0x40] sm:$0xff] %v469
          %480 = vst [vmem:[%s393 + $0x48] sm:$0xff] %v469
          %481 = vst [vmem:[%s393 + $0x50] sm:$0xff] %v469
          %482 = vst [vmem:[%s393 + $0x58] sm:$0xff] %v469
          %483 = vst [vmem:[%s393 + $0x60] sm:$0xff] %v469
          %484 = vst [vmem:[%s393 + $0x68] sm:$0xff] %v469
          %485 = vst [vmem:[%s393 + $0x70] sm:$0xff] %v469
          %486 = vst [vmem:[%s393 + $0x78] sm:$0xff] %v469
          %487 = vst [vmem:[%s393 + $0x80] sm:$0xff] %v469
          %488 = vst [vmem:[%s393 + $0x88] sm:$0xff] %v469
          %489 = vst [vmem:[%s393 + $0x90] sm:$0xff] %v469
          %490 = vst [vmem:[%s393 + $0x98] sm:$0xff] %v469
          %491 = vst [vmem:[%s393 + $0xa0] sm:$0xff] %v469
          %492 = vst [vmem:[%s393 + $0xa8] sm:$0xff] %v469
          %493 = vst [vmem:[%s393 + $0xb0] sm:$0xff] %v469
          %494 = vst [vmem:[%s393 + $0xb8] sm:$0xff] %v469
          %495 = vst [vmem:[%s393 + $0xc0] sm:$0xff] %v469
          %496 = vst [vmem:[%s393 + $0xc8] sm:$0xff] %v469
          %497 = vst [vmem:[%s393 + $0xd0] sm:$0xff] %v469
          %498 = vst [vmem:[%s393 + $0xd8] sm:$0xff] %v469
          %499 = vst [vmem:[%s393 + $0xe0] sm:$0xff] %v469
          %500 = vst [vmem:[%s393 + $0xe8] sm:$0xff] %v469
          %501 = vst [vmem:[%s393 + $0xf0] sm:$0xff] %v469
          %502 = vst [vmem:[%s393 + $0xf8] sm:$0xff] %v469
        $region44: #{tpu_custom_call.1} parent=39 // pred_fallthru
          _
        %v503 = vld [vmem:[%s409] sm:$0xf]
        %v504 = vld [vmem:[%s409 + $0x4] sm:$0xf]
        %v505 = vld [vmem:[%s409 + $0x8] sm:$0xf]
        %v506 = vld [vmem:[%s409 + $0xc] sm:$0xf]
        %v507 = vld [vmem:[%s409 + $0x10] sm:$0xf]
        %v508 = vld [vmem:[%s409 + $0x14] sm:$0xf]
        %v509 = vld [vmem:[%s409 + $0x18] sm:$0xf]
        %v510 = vld [vmem:[%s409 + $0x1c] sm:$0xf]
        %v511 = vld [vmem:[%s409 + $0x20] sm:$0xf]
        %v512 = vld [vmem:[%s409 + $0x24] sm:$0xf]
        %v513 = vld [vmem:[%s409 + $0x28] sm:$0xf]
        %v514 = vld [vmem:[%s409 + $0x2c] sm:$0xf]
        %v515 = vld [vmem:[%s409 + $0x30] sm:$0xf]
        %v516 = vld [vmem:[%s409 + $0x34] sm:$0xf]
        %v517 = vld [vmem:[%s409 + $0x38] sm:$0xf]
        %v518 = vld [vmem:[%s409 + $0x3c] sm:$0xf]
        %v519 = vld [vmem:[%s409 + $0x40] sm:$0xf]
        %v520 = vld [vmem:[%s409 + $0x44] sm:$0xf]
        %v521 = vld [vmem:[%s409 + $0x48] sm:$0xf]
        %v522 = vld [vmem:[%s409 + $0x4c] sm:$0xf]
        %v523 = vld [vmem:[%s409 + $0x50] sm:$0xf]
        %v524 = vld [vmem:[%s409 + $0x54] sm:$0xf]
        %v525 = vld [vmem:[%s409 + $0x58] sm:$0xf]
        %v526 = vld [vmem:[%s409 + $0x5c] sm:$0xf]
        %v527 = vld [vmem:[%s409 + $0x60] sm:$0xf]
        %v528 = vld [vmem:[%s409 + $0x64] sm:$0xf]
        %v529 = vld [vmem:[%s409 + $0x68] sm:$0xf]
        %v530 = vld [vmem:[%s409 + $0x6c] sm:$0xf]
        %v531 = vld [vmem:[%s409 + $0x70] sm:$0xf]
        %v532 = vld [vmem:[%s409 + $0x74] sm:$0xf]
        %v533 = vld [vmem:[%s409 + $0x78] sm:$0xf]
        %v534 = vld [vmem:[%s409 + $0x7c] sm:$0xf]
        %v535 = vld [vmem:[%s423] sm:$0xf]
        %v536 = vld [vmem:[%s423 + $0x4] sm:$0xf]
        %v537 = vld [vmem:[%s423 + $0x8] sm:$0xf]
        %v538 = vld [vmem:[%s423 + $0xc] sm:$0xf]
        %v539 = vld [vmem:[%s423 + $0x10] sm:$0xf]
        %v540 = vld [vmem:[%s423 + $0x14] sm:$0xf]
        %v541 = vld [vmem:[%s423 + $0x18] sm:$0xf]
        %v542 = vld [vmem:[%s423 + $0x1c] sm:$0xf]
        %v543 = vld [vmem:[%s423 + $0x20] sm:$0xf]
        %v544 = vld [vmem:[%s423 + $0x24] sm:$0xf]
        %v545 = vld [vmem:[%s423 + $0x28] sm:$0xf]
        %v546 = vld [vmem:[%s423 + $0x2c] sm:$0xf]
        %v547 = vld [vmem:[%s423 + $0x30] sm:$0xf]
        %v548 = vld [vmem:[%s423 + $0x34] sm:$0xf]
        %v549 = vld [vmem:[%s423 + $0x38] sm:$0xf]
        %v550 = vld [vmem:[%s423 + $0x3c] sm:$0xf]
        %v551 = vld [vmem:[%s437] sm:$0xf]
        %v552 = vld [vmem:[%s437 + $0x4] sm:$0xf]
        %v553 = vld [vmem:[%s437 + $0x8] sm:$0xf]
        %v554 = vld [vmem:[%s437 + $0xc] sm:$0xf]
        %v555 = vld [vmem:[%s437 + $0x10] sm:$0xf]
        %v556 = vld [vmem:[%s437 + $0x14] sm:$0xf]
        %v557 = vld [vmem:[%s437 + $0x18] sm:$0xf]
        %v558 = vld [vmem:[%s437 + $0x1c] sm:$0xf]
        %v559 = vld [vmem:[%s437 + $0x20] sm:$0xf]
        %v560 = vld [vmem:[%s437 + $0x24] sm:$0xf]
        %v561 = vld [vmem:[%s437 + $0x28] sm:$0xf]
        %v562 = vld [vmem:[%s437 + $0x2c] sm:$0xf]
        %v563 = vld [vmem:[%s437 + $0x30] sm:$0xf]
        %v564 = vld [vmem:[%s437 + $0x34] sm:$0xf]
        %v565 = vld [vmem:[%s437 + $0x38] sm:$0xf]
        %v566 = vld [vmem:[%s437 + $0x3c] sm:$0xf]
        %v599 = vunpack.c.l.b16 %v503
        %v600 = vunpack.c.l.b16 %v504
        %v601 = vunpack.c.l.b16 %v505
        %v602 = vunpack.c.l.b16 %v506
        %v603 = vunpack.c.l.b16 %v507
        %v604 = vunpack.c.l.b16 %v508
        %v605 = vunpack.c.l.b16 %v509
        %v606 = vunpack.c.l.b16 %v510
        %v607 = vunpack.c.l.b16 %v511
        %v608 = vunpack.c.l.b16 %v512
        %v609 = vunpack.c.l.b16 %v513
        %v610 = vunpack.c.l.b16 %v514
        %v611 = vunpack.c.l.b16 %v515
        %v612 = vunpack.c.l.b16 %v516
        %v613 = vunpack.c.l.b16 %v517
        %v614 = vunpack.c.l.b16 %v518
        %v615 = vunpack.c.l.b16 %v519
        %v616 = vunpack.c.l.b16 %v520
        %v617 = vunpack.c.l.b16 %v521
        %v618 = vunpack.c.l.b16 %v522
        %v619 = vunpack.c.l.b16 %v523
        %v620 = vunpack.c.l.b16 %v524
        %v621 = vunpack.c.l.b16 %v525
        %v622 = vunpack.c.l.b16 %v526
        %v623 = vunpack.c.l.b16 %v527
        %v624 = vunpack.c.l.b16 %v528
        %v625 = vunpack.c.l.b16 %v529
        %v626 = vunpack.c.l.b16 %v530
        %v627 = vunpack.c.l.b16 %v531
        %v628 = vunpack.c.l.b16 %v532
        %v629 = vunpack.c.l.b16 %v533
        %v630 = vunpack.c.l.b16 %v534
        %v631 = vpack.c.b16 %v600, %v599
        %v632 = vpack.c.b16 %v602, %v601
        %v633 = vpack.c.b16 %v604, %v603
        %v634 = vpack.c.b16 %v606, %v605
        %v635 = vpack.c.b16 %v608, %v607
        %v636 = vpack.c.b16 %v610, %v609
        %v637 = vpack.c.b16 %v612, %v611
        %v638 = vpack.c.b16 %v614, %v613
        %v639 = vpack.c.b16 %v616, %v615
        %v640 = vpack.c.b16 %v618, %v617
        %v641 = vpack.c.b16 %v620, %v619
        %v642 = vpack.c.b16 %v622, %v621
        %v643 = vpack.c.b16 %v624, %v623
        %v644 = vpack.c.b16 %v626, %v625
        %v645 = vpack.c.b16 %v628, %v627
        %v646 = vpack.c.b16 %v630, %v629
        %v679 = vunpack.c.l.b16 %v551
        %v680 = vunpack.c.l.b16 %v552
        %v681 = vunpack.c.l.b16 %v553
        %v682 = vunpack.c.l.b16 %v554
        %v683 = vunpack.c.l.b16 %v555
        %v684 = vunpack.c.l.b16 %v556
        %v685 = vunpack.c.l.b16 %v557
        %v686 = vunpack.c.l.b16 %v558
        %v687 = vunpack.c.l.b16 %v559
        %v688 = vunpack.c.l.b16 %v560
        %v689 = vunpack.c.l.b16 %v561
        %v690 = vunpack.c.l.b16 %v562
        %v691 = vunpack.c.l.b16 %v563
        %v692 = vunpack.c.l.b16 %v564
        %v693 = vunpack.c.l.b16 %v565
        %v694 = vunpack.c.l.b16 %v566
        %v695 = vpack.c.b16 %v680, %v679
        %v696 = vpack.c.b16 %v682, %v681
        %v697 = vpack.c.b16 %v684, %v683
        %v698 = vpack.c.b16 %v686, %v685
        %v699 = vpack.c.b16 %v688, %v687
        %v700 = vpack.c.b16 %v690, %v689
        %v701 = vpack.c.b16 %v692, %v691
        %v702 = vpack.c.b16 %v694, %v693
        %711 = vmatprep.subr.bf16.mxu0 0
        %712 = vmatpush1.bf16.msra.mxu0 %v695
        %713 = vmatprep.subr.bf16.mxu0 0
        %714 = vmatpush1.bf16.msra.mxu0 %v696
        %715 = vmatprep.subr.bf16.mxu0 0
        %716 = vmatpush1.bf16.msra.mxu0 %v697
        %717 = vmatprep.subr.bf16.mxu0 0
        %718 = vmatpush1.bf16.msra.mxu0 %v698
        %719 = vmatprep.subr.bf16.mxu0 0
        %720 = vmatpush1.bf16.msra.mxu0 %v699
        %721 = vmatprep.subr.bf16.mxu0 0
        %722 = vmatpush1.bf16.msra.mxu0 %v700
        %723 = vmatprep.subr.bf16.mxu0 0
        %724 = vmatpush1.bf16.msra.mxu0 %v701
        %725 = vmatprep.subr.bf16.mxu0 0
        %726 = vmatpush1.bf16.msra.mxu0 %v702
        %727 = vmatprep.subr.bf16.mxu0 0
        %728 = vmatpush1.bf16.msra.mxu0 0
        %729 = vmatprep.subr.bf16.mxu0 0
        %730 = vmatpush1.bf16.msra.mxu0 0
        %731 = vmatprep.subr.bf16.mxu0 0
        %732 = vmatpush1.bf16.msra.mxu0 0
        %733 = vmatprep.subr.bf16.mxu0 0
        %734 = vmatpush1.bf16.msra.mxu0 0
        %735 = vmatprep.subr.bf16.mxu0 0
        %736 = vmatpush1.bf16.msra.mxu0 0
        %737 = vmatprep.subr.bf16.mxu0 0
        %738 = vmatpush1.bf16.msra.mxu0 0
        %739 = vmatprep.subr.bf16.mxu0 0
        %740 = vmatpush1.bf16.msra.mxu0 0
        %741 = vmatprep.subr.bf16.mxu0 0
        %742 = vmatpush1.bf16.msra.mxu0 0
        %743 = vmatprep.mubr.bf16.mxu0 0
        %744 = vmatmul.mubr.bf16.gmra.mrb[0].mxu0 %v631
        %v745 = vpop.f32.mrb[0].mxu0
        %v746 = vadd.f32 0.0, %v745
        %v747 = vpop.f32.mrb[0].mxu0
        %v748 = vpop.f32.mrb[0].mxu0
        %v749 = vadd.f32 0.0, %v748
        %v750 = vpop.f32.mrb[0].mxu0
        %751 = vmatprep.mubr.bf16.mxu0 0
        %752 = vmatmul.mubr.bf16.gmra.mrb[0].mxu0 %v632
        %v753 = vpop.f32.mrb[0].mxu0
        %v754 = vadd.f32 0.0, %v753
        %v755 = vpop.f32.mrb[0].mxu0
        %v756 = vpop.f32.mrb[0].mxu0
        %v757 = vadd.f32 0.0, %v756
        %v758 = vpop.f32.mrb[0].mxu0
        %759 = vmatprep.mubr.bf16.mxu0 0
        %760 = vmatmul.mubr.bf16.gmra.mrb[0].mxu0 %v633
        %v761 = vpop.f32.mrb[0].mxu0
        %v762 = vadd.f32 0.0, %v761
        %v763 = vpop.f32.mrb[0].mxu0
        %v764 = vpop.f32.mrb[0].mxu0
        %v765 = vadd.f32 0.0, %v764
        %v766 = vpop.f32.mrb[0].mxu0
        %767 = vmatprep.mubr.bf16.mxu0 0
        %768 = vmatmul.mubr.bf16.gmra.mrb[0].mxu0 %v634
        %v769 = vpop.f32.mrb[0].mxu0
        %v770 = vadd.f32 0.0, %v769
        %v771 = vpop.f32.mrb[0].mxu0
        %v772 = vpop.f32.mrb[0].mxu0
        %v773 = vadd.f32 0.0, %v772
        %v774 = vpop.f32.mrb[0].mxu0
        %775 = vmatprep.mubr.bf16.mxu0 0
        %776 = vmatmul.mubr.bf16.gmra.mrb[0].mxu0 %v635
        %v777 = vpop.f32.mrb[0].mxu0
        %v778 = vadd.f32 0.0, %v777
        %v779 = vpop.f32.mrb[0].mxu0
        %v780 = vpop.f32.mrb[0].mxu0
        %v781 = vadd.f32 0.0, %v780
        %v782 = vpop.f32.mrb[0].mxu0
        %783 = vmatprep.mubr.bf16.mxu0 0
        %784 = vmatmul.mubr.bf16.gmra.mrb[0].mxu0 %v636
        %v785 = vpop.f32.mrb[0].mxu0
        %v786 = vadd.f32 0.0, %v785
        %v787 = vpop.f32.mrb[0].mxu0
        %v788 = vpop.f32.mrb[0].mxu0
        %v789 = vadd.f32 0.0, %v788
        %v790 = vpop.f32.mrb[0].mxu0
        %791 = vmatprep.mubr.bf16.mxu0 0
        %792 = vmatmul.mubr.bf16.gmra.mrb[0].mxu0 %v637
        %v793 = vpop.f32.mrb[0].mxu0
        %v794 = vadd.f32 0.0, %v793
        %v795 = vpop.f32.mrb[0].mxu0
        %v796 = vpop.f32.mrb[0].mxu0
        %v797 = vadd.f32 0.0, %v796
        %v798 = vpop.f32.mrb[0].mxu0
        %799 = vmatprep.mubr.bf16.mxu0 0
        %800 = vmatmul.mubr.bf16.gmra.mrb[0].mxu0 %v638
        %v801 = vpop.f32.mrb[0].mxu0
        %v802 = vadd.f32 0.0, %v801
        %v803 = vpop.f32.mrb[0].mxu0
        %v804 = vpop.f32.mrb[0].mxu0
        %v805 = vadd.f32 0.0, %v804
        %v806 = vpop.f32.mrb[0].mxu0
        %807 = vmatprep.mubr.bf16.mxu0 0
        %808 = vmatmul.mubr.bf16.gmra.mrb[0].mxu0 %v639
        %v809 = vpop.f32.mrb[0].mxu0
        %v810 = vadd.f32 0.0, %v809
        %v811 = vpop.f32.mrb[0].mxu0
        %v812 = vpop.f32.mrb[0].mxu0
        %v813 = vadd.f32 0.0, %v812
        %v814 = vpop.f32.mrb[0].mxu0
        %815 = vmatprep.mubr.bf16.mxu0 0
        %816 = vmatmul.mubr.bf16.gmra.mrb[0].mxu0 %v640
        %v817 = vpop.f32.mrb[0].mxu0
        %v818 = vadd.f32 0.0, %v817
        %v819 = vpop.f32.mrb[0].mxu0
        %v820 = vpop.f32.mrb[0].mxu0
        %v821 = vadd.f32 0.0, %v820
        %v822 = vpop.f32.mrb[0].mxu0
        %823 = vmatprep.mubr.bf16.mxu0 0
        %824 = vmatmul.mubr.bf16.gmra.mrb[0].mxu0 %v641
        %v825 = vpop.f32.mrb[0].mxu0
        %v826 = vadd.f32 0.0, %v825
        %v827 = vpop.f32.mrb[0].mxu0
        %v828 = vpop.f32.mrb[0].mxu0
        %v829 = vadd.f32 0.0, %v828
        %v830 = vpop.f32.mrb[0].mxu0
        %831 = vmatprep.mubr.bf16.mxu0 0
        %832 = vmatmul.mubr.bf16.gmra.mrb[0].mxu0 %v642
        %v833 = vpop.f32.mrb[0].mxu0
        %v834 = vadd.f32 0.0, %v833
        %v835 = vpop.f32.mrb[0].mxu0
        %v836 = vpop.f32.mrb[0].mxu0
        %v837 = vadd.f32 0.0, %v836
        %v838 = vpop.f32.mrb[0].mxu0
        %839 = vmatprep.mubr.bf16.mxu0 0
        %840 = vmatmul.mubr.bf16.gmra.mrb[0].mxu0 %v643
        %v841 = vpop.f32.mrb[0].mxu0
        %v842 = vadd.f32 0.0, %v841
        %v843 = vpop.f32.mrb[0].mxu0
        %v844 = vpop.f32.mrb[0].mxu0
        %v845 = vadd.f32 0.0, %v844
        %v846 = vpop.f32.mrb[0].mxu0
        %847 = vmatprep.mubr.bf16.mxu0 0
        %848 = vmatmul.mubr.bf16.gmra.mrb[0].mxu0 %v644
        %v849 = vpop.f32.mrb[0].mxu0
        %v850 = vadd.f32 0.0, %v849
        %v851 = vpop.f32.mrb[0].mxu0
        %v852 = vpop.f32.mrb[0].mxu0
        %v853 = vadd.f32 0.0, %v852
        %v854 = vpop.f32.mrb[0].mxu0
        %855 = vmatprep.mubr.bf16.mxu0 0
        %856 = vmatmul.mubr.bf16.gmra.mrb[0].mxu0 %v645
        %v857 = vpop.f32.mrb[0].mxu0
        %v858 = vadd.f32 0.0, %v857
        %v859 = vpop.f32.mrb[0].mxu0
        %v860 = vpop.f32.mrb[0].mxu0
        %v861 = vadd.f32 0.0, %v860
        %v862 = vpop.f32.mrb[0].mxu0
        %863 = vmatprep.mubr.bf16.mxu0 0
        %864 = vmatmul.mubr.bf16.gmra.mrb[0].mxu0 %v646
        %v865 = vpop.f32.mrb[0].mxu0
        %v866 = vadd.f32 0.0, %v865
        %v867 = vpop.f32.mrb[0].mxu0
        %v868 = vpop.f32.mrb[0].mxu0
        %v869 = vadd.f32 0.0, %v868
        %v870 = vpop.f32.mrb[0].mxu0
        %871 = vdwg.mxu0
        %v888 = vunpack.c.l.b16 %v535
        %v889 = vunpack.c.l.b16 %v536
        %v890 = vunpack.c.l.b16 %v537
        %v891 = vunpack.c.l.b16 %v538
        %v892 = vunpack.c.l.b16 %v539
        %v893 = vunpack.c.l.b16 %v540
        %v894 = vunpack.c.l.b16 %v541
        %v895 = vunpack.c.l.b16 %v542
        %v896 = vunpack.c.l.b16 %v543
        %v897 = vunpack.c.l.b16 %v544
        %v898 = vunpack.c.l.b16 %v545
        %v899 = vunpack.c.l.b16 %v546
        %v900 = vunpack.c.l.b16 %v547
        %v901 = vunpack.c.l.b16 %v548
        %v902 = vunpack.c.l.b16 %v549
        %v903 = vunpack.c.l.b16 %v550
        %v904 = vpack.c.b16 %v889, %v888
        %v905 = vpack.c.b16 %v891, %v890
        %v906 = vpack.c.b16 %v893, %v892
        %v907 = vpack.c.b16 %v895, %v894
        %v908 = vpack.c.b16 %v897, %v896
        %v909 = vpack.c.b16 %v899, %v898
        %v910 = vpack.c.b16 %v901, %v900
        %v911 = vpack.c.b16 %v903, %v902
        %920 = vmatprep.subr.bf16.mxu0 0
        %921 = vmatpush1.bf16.msra.mxu0 %v904
        %922 = vmatprep.subr.bf16.mxu0 0
        %923 = vmatpush1.bf16.msra.mxu0 %v905
        %924 = vmatprep.subr.bf16.mxu0 0
        %925 = vmatpush1.bf16.msra.mxu0 %v906
        %926 = vmatprep.subr.bf16.mxu0 0
        %927 = vmatpush1.bf16.msra.mxu0 %v907
        %928 = vmatprep.subr.bf16.mxu0 0
        %929 = vmatpush1.bf16.msra.mxu0 %v908
        %930 = vmatprep.subr.bf16.mxu0 0
        %931 = vmatpush1.bf16.msra.mxu0 %v909
        %932 = vmatprep.subr.bf16.mxu0 0
        %933 = vmatpush1.bf16.msra.mxu0 %v910
        %934 = vmatprep.subr.bf16.mxu0 0
        %935 = vmatpush1.bf16.msra.mxu0 %v911
        %936 = vmatprep.subr.bf16.mxu0 0
        %937 = vmatpush1.bf16.msra.mxu0 0
        %938 = vmatprep.subr.bf16.mxu0 0
        %939 = vmatpush1.bf16.msra.mxu0 0
        %940 = vmatprep.subr.bf16.mxu0 0
        %941 = vmatpush1.bf16.msra.mxu0 0
        %942 = vmatprep.subr.bf16.mxu0 0
        %943 = vmatpush1.bf16.msra.mxu0 0
        %944 = vmatprep.subr.bf16.mxu0 0
        %945 = vmatpush1.bf16.msra.mxu0 0
        %946 = vmatprep.subr.bf16.mxu0 0
        %947 = vmatpush1.bf16.msra.mxu0 0
        %948 = vmatprep.subr.bf16.mxu0 0
        %949 = vmatpush1.bf16.msra.mxu0 0
        %950 = vmatprep.subr.bf16.mxu0 0
        %951 = vmatpush1.bf16.msra.mxu0 0
        %952 = vmatprep.mubr.bf16.mxu0 0
        %953 = vmatmul.mubr.bf16.gmra.mrb[0].mxu0 %v631
        %v954 = vpop.f32.mrb[0].mxu0
        %v955 = vadd.f32 %v746, %v954
        %v956 = vpop.f32.mrb[0].mxu0
        %v957 = vpop.f32.mrb[0].mxu0
        %v958 = vadd.f32 %v749, %v957
        %v959 = vpop.f32.mrb[0].mxu0
        %960 = vmatprep.mubr.bf16.mxu0 0
        %961 = vmatmul.mubr.bf16.gmra.mrb[0].mxu0 %v632
        %v962 = vpop.f32.mrb[0].mxu0
        %v963 = vadd.f32 %v754, %v962
        %v964 = vpop.f32.mrb[0].mxu0
        %v965 = vpop.f32.mrb[0].mxu0
        %v966 = vadd.f32 %v757, %v965
        %v967 = vpop.f32.mrb[0].mxu0
        %968 = vmatprep.mubr.bf16.mxu0 0
        %969 = vmatmul.mubr.bf16.gmra.mrb[0].mxu0 %v633
        %v970 = vpop.f32.mrb[0].mxu0
        %v971 = vadd.f32 %v762, %v970
        %v972 = vpop.f32.mrb[0].mxu0
        %v973 = vpop.f32.mrb[0].mxu0
        %v974 = vadd.f32 %v765, %v973
        %v975 = vpop.f32.mrb[0].mxu0
        %976 = vmatprep.mubr.bf16.mxu0 0
        %977 = vmatmul.mubr.bf16.gmra.mrb[0].mxu0 %v634
        %v978 = vpop.f32.mrb[0].mxu0
        %v979 = vadd.f32 %v770, %v978
        %v980 = vpop.f32.mrb[0].mxu0
        %v981 = vpop.f32.mrb[0].mxu0
        %v982 = vadd.f32 %v773, %v981
        %v983 = vpop.f32.mrb[0].mxu0
        %984 = vmatprep.mubr.bf16.mxu0 0
        %985 = vmatmul.mubr.bf16.gmra.mrb[0].mxu0 %v635
        %v986 = vpop.f32.mrb[0].mxu0
        %v987 = vadd.f32 %v778, %v986
        %v988 = vpop.f32.mrb[0].mxu0
        %v989 = vpop.f32.mrb[0].mxu0
        %v990 = vadd.f32 %v781, %v989
        %v991 = vpop.f32.mrb[0].mxu0
        %992 = vmatprep.mubr.bf16.mxu0 0
        %993 = vmatmul.mubr.bf16.gmra.mrb[0].mxu0 %v636
        %v994 = vpop.f32.mrb[0].mxu0
        %v995 = vadd.f32 %v786, %v994
        %v996 = vpop.f32.mrb[0].mxu0
        %v997 = vpop.f32.mrb[0].mxu0
        %v998 = vadd.f32 %v789, %v997
        %v999 = vpop.f32.mrb[0].mxu0
        %1000 = vmatprep.mubr.bf16.mxu0 0
        %1001 = vmatmul.mubr.bf16.gmra.mrb[0].mxu0 %v637
        %v1002 = vpop.f32.mrb[0].mxu0
        %v1003 = vadd.f32 %v794, %v1002
        %v1004 = vpop.f32.mrb[0].mxu0
        %v1005 = vpop.f32.mrb[0].mxu0
        %v1006 = vadd.f32 %v797, %v1005
        %v1007 = vpop.f32.mrb[0].mxu0
        %1008 = vmatprep.mubr.bf16.mxu0 0
        %1009 = vmatmul.mubr.bf16.gmra.mrb[0].mxu0 %v638
        %v1010 = vpop.f32.mrb[0].mxu0
        %v1011 = vadd.f32 %v802, %v1010
        %v1012 = vpop.f32.mrb[0].mxu0
        %v1013 = vpop.f32.mrb[0].mxu0
        %v1014 = vadd.f32 %v805, %v1013
        %v1015 = vpop.f32.mrb[0].mxu0
        %1016 = vmatprep.mubr.bf16.mxu0 0
        %1017 = vmatmul.mubr.bf16.gmra.mrb[0].mxu0 %v639
        %v1018 = vpop.f32.mrb[0].mxu0
        %v1019 = vadd.f32 %v810, %v1018
        %v1020 = vpop.f32.mrb[0].mxu0
        %v1021 = vpop.f32.mrb[0].mxu0
        %v1022 = vadd.f32 %v813, %v1021
        %v1023 = vpop.f32.mrb[0].mxu0
        %1024 = vmatprep.mubr.bf16.mxu0 0
        %1025 = vmatmul.mubr.bf16.gmra.mrb[0].mxu0 %v640
        %v1026 = vpop.f32.mrb[0].mxu0
        %v1027 = vadd.f32 %v818, %v1026
        %v1028 = vpop.f32.mrb[0].mxu0
        %v1029 = vpop.f32.mrb[0].mxu0
        %v1030 = vadd.f32 %v821, %v1029
        %v1031 = vpop.f32.mrb[0].mxu0
        %1032 = vmatprep.mubr.bf16.mxu0 0
        %1033 = vmatmul.mubr.bf16.gmra.mrb[0].mxu0 %v641
        %v1034 = vpop.f32.mrb[0].mxu0
        %v1035 = vadd.f32 %v826, %v1034
        %v1036 = vpop.f32.mrb[0].mxu0
        %v1037 = vpop.f32.mrb[0].mxu0
        %v1038 = vadd.f32 %v829, %v1037
        %v1039 = vpop.f32.mrb[0].mxu0
        %1040 = vmatprep.mubr.bf16.mxu0 0
        %1041 = vmatmul.mubr.bf16.gmra.mrb[0].mxu0 %v642
        %v1042 = vpop.f32.mrb[0].mxu0
        %v1043 = vadd.f32 %v834, %v1042
        %v1044 = vpop.f32.mrb[0].mxu0
        %v1045 = vpop.f32.mrb[0].mxu0
        %v1046 = vadd.f32 %v837, %v1045
        %v1047 = vpop.f32.mrb[0].mxu0
        %1048 = vmatprep.mubr.bf16.mxu0 0
        %1049 = vmatmul.mubr.bf16.gmra.mrb[0].mxu0 %v643
        %v1050 = vpop.f32.mrb[0].mxu0
        %v1051 = vadd.f32 %v842, %v1050
        %v1052 = vpop.f32.mrb[0].mxu0
        %v1053 = vpop.f32.mrb[0].mxu0
        %v1054 = vadd.f32 %v845, %v1053
        %v1055 = vpop.f32.mrb[0].mxu0
        %1056 = vmatprep.mubr.bf16.mxu0 0
        %1057 = vmatmul.mubr.bf16.gmra.mrb[0].mxu0 %v644
        %v1058 = vpop.f32.mrb[0].mxu0
        %v1059 = vadd.f32 %v850, %v1058
        %v1060 = vpop.f32.mrb[0].mxu0
        %v1061 = vpop.f32.mrb[0].mxu0
        %v1062 = vadd.f32 %v853, %v1061
        %v1063 = vpop.f32.mrb[0].mxu0
        %1064 = vmatprep.mubr.bf16.mxu0 0
        %1065 = vmatmul.mubr.bf16.gmra.mrb[0].mxu0 %v645
        %v1066 = vpop.f32.mrb[0].mxu0
        %v1067 = vadd.f32 %v858, %v1066
        %v1068 = vpop.f32.mrb[0].mxu0
        %v1069 = vpop.f32.mrb[0].mxu0
        %v1070 = vadd.f32 %v861, %v1069
        %v1071 = vpop.f32.mrb[0].mxu0
        %1072 = vmatprep.mubr.bf16.mxu0 0
        %1073 = vmatmul.mubr.bf16.gmra.mrb[0].mxu0 %v646
        %v1074 = vpop.f32.mrb[0].mxu0
        %v1075 = vadd.f32 %v866, %v1074
        %v1076 = vpop.f32.mrb[0].mxu0
        %v1077 = vpop.f32.mrb[0].mxu0
        %v1078 = vadd.f32 %v869, %v1077
        %v1079 = vpop.f32.mrb[0].mxu0
        %1080 = vdwg.mxu0
        %v1081 = vld [vmem:[%s393] sm:$0xff]
        %v1082 = vld [vmem:[%s393 + $0x8] sm:$0xff]
        %v1083 = vld [vmem:[%s393 + $0x10] sm:$0xff]
        %v1084 = vld [vmem:[%s393 + $0x18] sm:$0xff]
        %v1085 = vld [vmem:[%s393 + $0x20] sm:$0xff]
        %v1086 = vld [vmem:[%s393 + $0x28] sm:$0xff]
        %v1087 = vld [vmem:[%s393 + $0x30] sm:$0xff]
        %v1088 = vld [vmem:[%s393 + $0x38] sm:$0xff]
        %v1089 = vld [vmem:[%s393 + $0x40] sm:$0xff]
        %v1090 = vld [vmem:[%s393 + $0x48] sm:$0xff]
        %v1091 = vld [vmem:[%s393 + $0x50] sm:$0xff]
        %v1092 = vld [vmem:[%s393 + $0x58] sm:$0xff]
        %v1093 = vld [vmem:[%s393 + $0x60] sm:$0xff]
        %v1094 = vld [vmem:[%s393 + $0x68] sm:$0xff]
        %v1095 = vld [vmem:[%s393 + $0x70] sm:$0xff]
        %v1096 = vld [vmem:[%s393 + $0x78] sm:$0xff]
        %v1097 = vld [vmem:[%s393 + $0x80] sm:$0xff]
        %v1098 = vld [vmem:[%s393 + $0x88] sm:$0xff]
        %v1099 = vld [vmem:[%s393 + $0x90] sm:$0xff]
        %v1100 = vld [vmem:[%s393 + $0x98] sm:$0xff]
        %v1101 = vld [vmem:[%s393 + $0xa0] sm:$0xff]
        %v1102 = vld [vmem:[%s393 + $0xa8] sm:$0xff]
        %v1103 = vld [vmem:[%s393 + $0xb0] sm:$0xff]
        %v1104 = vld [vmem:[%s393 + $0xb8] sm:$0xff]
        %v1105 = vld [vmem:[%s393 + $0xc0] sm:$0xff]
        %v1106 = vld [vmem:[%s393 + $0xc8] sm:$0xff]
        %v1107 = vld [vmem:[%s393 + $0xd0] sm:$0xff]
        %v1108 = vld [vmem:[%s393 + $0xd8] sm:$0xff]
        %v1109 = vld [vmem:[%s393 + $0xe0] sm:$0xff]
        %v1110 = vld [vmem:[%s393 + $0xe8] sm:$0xff]
        %v1111 = vld [vmem:[%s393 + $0xf0] sm:$0xff]
        %v1112 = vld [vmem:[%s393 + $0xf8] sm:$0xff]
        %v1113 = vld [vmem:[%s451] sm:$0xff]
        %v1114 = vld [vmem:[%s451 + $0x8] sm:$0xff]
        %v1115 = vld [vmem:[%s451 + $0x10] sm:$0xff]
        %v1116 = vld [vmem:[%s451 + $0x18] sm:$0xff]
        %v1117 = vld [vmem:[%s451 + $0x20] sm:$0xff]
        %v1118 = vld [vmem:[%s451 + $0x28] sm:$0xff]
        %v1119 = vld [vmem:[%s451 + $0x30] sm:$0xff]
        %v1120 = vld [vmem:[%s451 + $0x38] sm:$0xff]
        %v1121 = vld [vmem:[%s451 + $0x40] sm:$0xff]
        %v1122 = vld [vmem:[%s451 + $0x48] sm:$0xff]
        %v1123 = vld [vmem:[%s451 + $0x50] sm:$0xff]
        %v1124 = vld [vmem:[%s451 + $0x58] sm:$0xff]
        %v1125 = vld [vmem:[%s451 + $0x60] sm:$0xff]
        %v1126 = vld [vmem:[%s451 + $0x68] sm:$0xff]
        %v1127 = vld [vmem:[%s451 + $0x70] sm:$0xff]
        %v1128 = vld [vmem:[%s451 + $0x78] sm:$0xff]
        %v1129 = vld [vmem:[%s451 + $0x80] sm:$0xff]
        %v1130 = vld [vmem:[%s451 + $0x88] sm:$0xff]
        %v1131 = vld [vmem:[%s451 + $0x90] sm:$0xff]
        %v1132 = vld [vmem:[%s451 + $0x98] sm:$0xff]
        %v1133 = vld [vmem:[%s451 + $0xa0] sm:$0xff]
        %v1134 = vld [vmem:[%s451 + $0xa8] sm:$0xff]
        %v1135 = vld [vmem:[%s451 + $0xb0] sm:$0xff]
        %v1136 = vld [vmem:[%s451 + $0xb8] sm:$0xff]
        %v1137 = vld [vmem:[%s451 + $0xc0] sm:$0xff]
        %v1138 = vld [vmem:[%s451 + $0xc8] sm:$0xff]
        %v1139 = vld [vmem:[%s451 + $0xd0] sm:$0xff]
        %v1140 = vld [vmem:[%s451 + $0xd8] sm:$0xff]
        %v1141 = vld [vmem:[%s451 + $0xe0] sm:$0xff]
        %v1142 = vld [vmem:[%s451 + $0xe8] sm:$0xff]
        %v1143 = vld [vmem:[%s451 + $0xf0] sm:$0xff]
        %v1144 = vld [vmem:[%s451 + $0xf8] sm:$0xff]
        %1146 = vset.pattern.permute.xlu0 0
        %1147 = vperm.xlu0 %1146, %v1113
        %v1148 = vpop.permute.xlu0 %1147
        %1151 = vset.pattern.permute.xlu0 0
        %1152 = vperm.xlu0 %1151, %v1114
        %v1153 = vpop.permute.xlu0 %1152
        %1156 = vset.pattern.permute.xlu0 0
        %1157 = vperm.xlu0 %1156, %v1115
        %v1158 = vpop.permute.xlu0 %1157
        %1161 = vset.pattern.permute.xlu0 0
        %1162 = vperm.xlu0 %1161, %v1116
        %v1163 = vpop.permute.xlu0 %1162
        %1166 = vset.pattern.permute.xlu0 0
        %1167 = vperm.xlu0 %1166, %v1117
        %v1168 = vpop.permute.xlu0 %1167
        %1171 = vset.pattern.permute.xlu0 0
        %1172 = vperm.xlu0 %1171, %v1118
        %v1173 = vpop.permute.xlu0 %1172
        %1176 = vset.pattern.permute.xlu0 0
        %1177 = vperm.xlu0 %1176, %v1119
        %v1178 = vpop.permute.xlu0 %1177
        %1181 = vset.pattern.permute.xlu0 0
        %1182 = vperm.xlu0 %1181, %v1120
        %v1183 = vpop.permute.xlu0 %1182
        %1186 = vset.pattern.permute.xlu0 0
        %1187 = vperm.xlu0 %1186, %v1121
        %v1188 = vpop.permute.xlu0 %1187
        %1191 = vset.pattern.permute.xlu0 0
        %1192 = vperm.xlu0 %1191, %v1122
        %v1193 = vpop.permute.xlu0 %1192
        %1196 = vset.pattern.permute.xlu0 0
        %1197 = vperm.xlu0 %1196, %v1123
        %v1198 = vpop.permute.xlu0 %1197
        %1201 = vset.pattern.permute.xlu0 0
        %1202 = vperm.xlu0 %1201, %v1124
        %v1203 = vpop.permute.xlu0 %1202
        %1206 = vset.pattern.permute.xlu0 0
        %1207 = vperm.xlu0 %1206, %v1125
        %v1208 = vpop.permute.xlu0 %1207
        %1211 = vset.pattern.permute.xlu0 0
        %1212 = vperm.xlu0 %1211, %v1126
        %v1213 = vpop.permute.xlu0 %1212
        %1216 = vset.pattern.permute.xlu0 0
        %1217 = vperm.xlu0 %1216, %v1127
        %v1218 = vpop.permute.xlu0 %1217
        %1221 = vset.pattern.permute.xlu0 0
        %1222 = vperm.xlu0 %1221, %v1128
        %v1223 = vpop.permute.xlu0 %1222
        %1226 = vset.pattern.permute.xlu0 0
        %1227 = vperm.xlu0 %1226, %v1129
        %v1228 = vpop.permute.xlu0 %1227
        %1231 = vset.pattern.permute.xlu0 0
        %1232 = vperm.xlu0 %1231, %v1130
        %v1233 = vpop.permute.xlu0 %1232
        %1236 = vset.pattern.permute.xlu0 0
        %1237 = vperm.xlu0 %1236, %v1131
        %v1238 = vpop.permute.xlu0 %1237
        %1241 = vset.pattern.permute.xlu0 0
        %1242 = vperm.xlu0 %1241, %v1132
        %v1243 = vpop.permute.xlu0 %1242
        %1246 = vset.pattern.permute.xlu0 0
        %1247 = vperm.xlu0 %1246, %v1133
        %v1248 = vpop.permute.xlu0 %1247
        %1251 = vset.pattern.permute.xlu0 0
        %1252 = vperm.xlu0 %1251, %v1134
        %v1253 = vpop.permute.xlu0 %1252
        %1256 = vset.pattern.permute.xlu0 0
        %1257 = vperm.xlu0 %1256, %v1135
        %v1258 = vpop.permute.xlu0 %1257
        %1261 = vset.pattern.permute.xlu0 0
        %1262 = vperm.xlu0 %1261, %v1136
        %v1263 = vpop.permute.xlu0 %1262
        %1266 = vset.pattern.permute.xlu0 0
        %1267 = vperm.xlu0 %1266, %v1137
        %v1268 = vpop.permute.xlu0 %1267
        %1271 = vset.pattern.permute.xlu0 0
        %1272 = vperm.xlu0 %1271, %v1138
        %v1273 = vpop.permute.xlu0 %1272
        %1276 = vset.pattern.permute.xlu0 0
        %1277 = vperm.xlu0 %1276, %v1139
        %v1278 = vpop.permute.xlu0 %1277
        %1281 = vset.pattern.permute.xlu0 0
        %1282 = vperm.xlu0 %1281, %v1140
        %v1283 = vpop.permute.xlu0 %1282
        %1286 = vset.pattern.permute.xlu0 0
        %1287 = vperm.xlu0 %1286, %v1141
        %v1288 = vpop.permute.xlu0 %1287
        %1291 = vset.pattern.permute.xlu0 0
        %1292 = vperm.xlu0 %1291, %v1142
        %v1293 = vpop.permute.xlu0 %1292
        %1296 = vset.pattern.permute.xlu0 0
        %1297 = vperm.xlu0 %1296, %v1143
        %v1298 = vpop.permute.xlu0 %1297
        %1301 = vset.pattern.permute.xlu0 0
        %1302 = vperm.xlu0 %1301, %v1144
        %v1303 = vpop.permute.xlu0 %1302
        %v1305 = vmul.f32 %v955, %v1148
        %v1306 = vmul.f32 %v958, %v1153
        %v1307 = vmul.f32 %v963, %v1158
        %v1308 = vmul.f32 %v966, %v1163
        %v1309 = vmul.f32 %v971, %v1168
        %v1310 = vmul.f32 %v974, %v1173
        %v1311 = vmul.f32 %v979, %v1178
        %v1312 = vmul.f32 %v982, %v1183
        %v1313 = vmul.f32 %v987, %v1188
        %v1314 = vmul.f32 %v990, %v1193
        %v1315 = vmul.f32 %v995, %v1198
        %v1316 = vmul.f32 %v998, %v1203
        %v1317 = vmul.f32 %v1003, %v1208
        %v1318 = vmul.f32 %v1006, %v1213
        %v1319 = vmul.f32 %v1011, %v1218
        %v1320 = vmul.f32 %v1014, %v1223
        %v1321 = vmul.f32 %v1019, %v1228
        %v1322 = vmul.f32 %v1022, %v1233
        %v1323 = vmul.f32 %v1027, %v1238
        %v1324 = vmul.f32 %v1030, %v1243
        %v1325 = vmul.f32 %v1035, %v1248
        %v1326 = vmul.f32 %v1038, %v1253
        %v1327 = vmul.f32 %v1043, %v1258
        %v1328 = vmul.f32 %v1046, %v1263
        %v1329 = vmul.f32 %v1051, %v1268
        %v1330 = vmul.f32 %v1054, %v1273
        %v1331 = vmul.f32 %v1059, %v1278
        %v1332 = vmul.f32 %v1062, %v1283
        %v1333 = vmul.f32 %v1067, %v1288
        %v1334 = vmul.f32 %v1070, %v1293
        %v1335 = vmul.f32 %v1075, %v1298
        %v1336 = vmul.f32 %v1078, %v1303
        %v1337 = vadd.f32 %v1081, %v1305
        %v1338 = vadd.f32 %v1082, %v1306
        %v1339 = vadd.f32 %v1083, %v1307
        %v1340 = vadd.f32 %v1084, %v1308
        %v1341 = vadd.f32 %v1085, %v1309
        %v1342 = vadd.f32 %v1086, %v1310
        %v1343 = vadd.f32 %v1087, %v1311
        %v1344 = vadd.f32 %v1088, %v1312
        %v1345 = vadd.f32 %v1089, %v1313
        %v1346 = vadd.f32 %v1090, %v1314
        %v1347 = vadd.f32 %v1091, %v1315
        %v1348 = vadd.f32 %v1092, %v1316
        %v1349 = vadd.f32 %v1093, %v1317
        %v1350 = vadd.f32 %v1094, %v1318
        %v1351 = vadd.f32 %v1095, %v1319
        %v1352 = vadd.f32 %v1096, %v1320
        %v1353 = vadd.f32 %v1097, %v1321
        %v1354 = vadd.f32 %v1098, %v1322
        %v1355 = vadd.f32 %v1099, %v1323
        %v1356 = vadd.f32 %v1100, %v1324
        %v1357 = vadd.f32 %v1101, %v1325
        %v1358 = vadd.f32 %v1102, %v1326
        %v1359 = vadd.f32 %v1103, %v1327
        %v1360 = vadd.f32 %v1104, %v1328
        %v1361 = vadd.f32 %v1105, %v1329
        %v1362 = vadd.f32 %v1106, %v1330
        %v1363 = vadd.f32 %v1107, %v1331
        %v1364 = vadd.f32 %v1108, %v1332
        %v1365 = vadd.f32 %v1109, %v1333
        %v1366 = vadd.f32 %v1110, %v1334
        %v1367 = vadd.f32 %v1111, %v1335
        %v1368 = vadd.f32 %v1112, %v1336
        %1369 = vst [vmem:[%s393] sm:$0xff] %v1337
        %1370 = vst [vmem:[%s393 + $0x8] sm:$0xff] %v1338
        %1371 = vst [vmem:[%s393 + $0x10] sm:$0xff] %v1339
        %1372 = vst [vmem:[%s393 + $0x18] sm:$0xff] %v1340
        %1373 = vst [vmem:[%s393 + $0x20] sm:$0xff] %v1341
        %1374 = vst [vmem:[%s393 + $0x28] sm:$0xff] %v1342
        %1375 = vst [vmem:[%s393 + $0x30] sm:$0xff] %v1343
        %1376 = vst [vmem:[%s393 + $0x38] sm:$0xff] %v1344
        %1377 = vst [vmem:[%s393 + $0x40] sm:$0xff] %v1345
        %1378 = vst [vmem:[%s393 + $0x48] sm:$0xff] %v1346
        %1379 = vst [vmem:[%s393 + $0x50] sm:$0xff] %v1347
        %1380 = vst [vmem:[%s393 + $0x58] sm:$0xff] %v1348
        %1381 = vst [vmem:[%s393 + $0x60] sm:$0xff] %v1349
        %1382 = vst [vmem:[%s393 + $0x68] sm:$0xff] %v1350
        %1383 = vst [vmem:[%s393 + $0x70] sm:$0xff] %v1351
        %1384 = vst [vmem:[%s393 + $0x78] sm:$0xff] %v1352
        %1385 = vst [vmem:[%s393 + $0x80] sm:$0xff] %v1353
        %1386 = vst [vmem:[%s393 + $0x88] sm:$0xff] %v1354
        %1387 = vst [vmem:[%s393 + $0x90] sm:$0xff] %v1355
        %1388 = vst [vmem:[%s393 + $0x98] sm:$0xff] %v1356
        %1389 = vst [vmem:[%s393 + $0xa0] sm:$0xff] %v1357
        %1390 = vst [vmem:[%s393 + $0xa8] sm:$0xff] %v1358
        %1391 = vst [vmem:[%s393 + $0xb0] sm:$0xff] %v1359
        %1392 = vst [vmem:[%s393 + $0xb8] sm:$0xff] %v1360
        %1393 = vst [vmem:[%s393 + $0xc0] sm:$0xff] %v1361
        %1394 = vst [vmem:[%s393 + $0xc8] sm:$0xff] %v1362
        %1395 = vst [vmem:[%s393 + $0xd0] sm:$0xff] %v1363
        %1396 = vst [vmem:[%s393 + $0xd8] sm:$0xff] %v1364
        %1397 = vst [vmem:[%s393 + $0xe0] sm:$0xff] %v1365
        %1398 = vst [vmem:[%s393 + $0xe8] sm:$0xff] %v1366
        %1399 = vst [vmem:[%s393 + $0xf0] sm:$0xff] %v1367
        %1400 = vst [vmem:[%s393 + $0xf8] sm:$0xff] %v1368
        %s1401 = sand.u32 %s203, 1
        %s1402 = scalar_lea.sflag [#allocation3], %s1401
        %s1403 = sand.u32 %s203, 1
        %s1404 = smul.addr %s1403, 256
        %s1405 = scalar_lea.vmem [#allocation2], %s1404
        // Predicated region
        $region45: #{tpu_custom_call.1} parent=39 // pred_check
          %p1406 = pneg %p213
        $region46: #{tpu_custom_call.1} parent=39 // pred_check_branch
          %1408 = sbr.rel (%p1406) target = $region48
        $region47: #{tpu_custom_call.1} parent=39 // pred_region
          %s1409 = smul.u32 32, %s26
          %s1411 = ssub.s32 4096, 4096
          %1412 = vsyncadd %s1402, %s1411
          %s1413 = smul.addr %s25, 32
          %s1414 = sadd.s32 %s1409, %s1413
          %s1415 = smul.addr %s1414, 128
          %s1416 = scalar_lea.hbm %s5, %s1415
          %s1417 = sshll.u32 %s1405, 4
          %s1418 = int_to_ptr.vmem [resolvable:$true] %s1417
          %1423 = dma.vmem_to_hbm [thread:$0]  %s1418, 4096, %s1416, %s1402, 128, 128, 8
        $region48: #{tpu_custom_call.1} parent=39 // pred_fallthru
          _
      $region40: #{tpu_custom_call.1} parent=5 // pred_fallthru
        _
      %p1424 = scmp.le.s32.totalorder 2, %s14
      // Predicated region
      $region49: #{tpu_custom_call.1} parent=5 // pred_check
        %p1425 = pneg %p1424
      $region50: #{tpu_custom_call.1} parent=5 // pred_check_branch
        %1427 = sbr.rel (%p1425) target = $region52
      $region51: #{tpu_custom_call.1} parent=5 // pred_region
        %s1428 = ssub.s32 %s14, 2
        // Predicated region
        $region53: #{tpu_custom_call.1} parent=51 // pred_check
          %p1429 = pneg %p219
        $region54: #{tpu_custom_call.1} parent=51 // pred_check_branch
          %1431 = sbr.rel (%p1429) target = $region56
        $region55: #{tpu_custom_call.1} parent=51 // pred_region
          %s1432 = sand.u32 %s204, 1
          %s1433 = scalar_lea.sflag [#allocation3], %s1432
          %s1434 = sand.u32 %s204, 1
          %s1435 = smul.addr %s1434, 256
          %s1436 = scalar_lea.vmem [#allocation2], %s1435
          %1437 = dma.done %s1433, 4096
        $region56: #{tpu_custom_call.1} parent=51 // pred_fallthru
          _
      $region52: #{tpu_custom_call.1} parent=5 // pred_fallthru
        _
    $region6: #{tpu_custom_call.1} parent=1 // loop_footer
      %s18 = sadd.s32 1, %s14
    $region7: #{tpu_custom_call.1} parent=1 // loop_footer_branch
      %13 = sbr.rel target = $region3
    $region8: #{tpu_custom_call.1} parent=1 // loop_exit
      _
    %1438 = vsyncpa [#allocation3], 1
    %s1439 = scalar_lea.sflag [#allocation3], 1
    %1440 = vsyncpa %s1439, 1

</llo_original>
